<compile_context>
chip_gen: v5e
topology: v5e:2x2
jax: 0.10.0
libtpu: 0.0.40
codegen_flags: <defaults>
</compile_context>

<pallas_src>
import functools

import jax
import jax.numpy as jnp
import numpy as np
from jax.experimental import pallas as pl
from jax.experimental.pallas import tpu as pltpu


def _round_up(x, m):
    return (x + m - 1) // m * m


# ---------------- Kernel 1: feature projection  h = x @ W^T + b ----------------
def _project_kernel(x_ref, wt_ref, b_ref, h_ref):
    acc = jnp.dot(x_ref[...], wt_ref[...], preferred_element_type=jnp.float32)
    h_ref[...] = (acc + b_ref[...]).astype(h_ref.dtype)


# ---------------- Kernel 2: aggregation  out = A @ h ---------------------------
def _aggregate_kernel(a_ref, h_ref, o_ref, acc_ref, *, t_k, h_resident):
    k = pl.program_id(1)

    @pl.when(k == 0)
    def _():
        acc_ref[...] = jnp.zeros_like(acc_ref)

    # int8 (0/1) tile -> bf16 on the VPU; MXU runs a bf16 matmul on all chips.
    a = a_ref[...].astype(jnp.bfloat16)

    if h_resident:
        start = pl.multiple_of(k * t_k, t_k)
        h_blk = h_ref[pl.ds(start, t_k), :]
    else:
        h_blk = h_ref[...]

    acc_ref[...] += jnp.dot(a, h_blk, preferred_element_type=jnp.float32)

    @pl.when(k == pl.num_programs(1) - 1)
    def _():
        o_ref[...] = acc_ref[...].astype(o_ref.dtype)


def gnn_layer(
    x,
    adjacency,
    weight,
    bias,
    *,
    adjacency_dtype=jnp.int8,          # exact for 0/1 adjacency; use bf16/f32 if weighted
    h_resident_budget_bytes=8 * 1024 * 1024,
    out_dtype=jnp.float32,
):
    """GNNLayer forward: adjacency @ (x @ weight.T + bias).

    x: [N, dim_in], adjacency: [N, N] dense binary, weight: [dim_out, dim_in],
    bias: [dim_out].  Returns [N, dim_out] in out_dtype.
    """
    N, dim_in = x.shape
    dim_out = weight.shape[0]

    n_128 = _round_up(N, 128)
    dout_pad = _round_up(dim_out, 128)        # lane-dense h / output

    # Row tile: up to 512, but keep >= 2 row tiles when possible (v7x dual-TC).
    t_m = min(512, n_128)
    if n_128 > 128 and n_128 <= t_m:
        t_m = _round_up((n_128 + 1) // 2, 128)
    n_pad = _round_up(n_128, t_m)

    # Contraction tile: largest multiple of t_m (<= 2048) dividing n_pad.
    t_k = t_m
    for mult in range(min(2048, n_pad) // t_m, 0, -1):
        cand = mult * t_m
        if n_pad % cand == 0:
            t_k = cand
            break

    # --- padded operands ---------------------------------------------------
    # Padded x rows give h rows equal to the bias, but padded A columns are
    # exactly zero (int8 zero-pad), so those rows never reach the output.
    x_pad = jnp.pad(x, ((0, n_pad - N), (0, 0))).astype(jnp.bfloat16)
    wt_pad = jnp.pad(weight.T, ((0, 0), (0, dout_pad - dim_out))).astype(jnp.bfloat16)
    b_pad = jnp.pad(
        bias.reshape(1, dim_out).astype(jnp.float32),
        ((0, 0), (0, dout_pad - dim_out)),
    )
    a_pad = adjacency
    if a_pad.dtype != adjacency_dtype:
        a_pad = a_pad.astype(adjacency_dtype)
    if n_pad != N:
        a_pad = jnp.pad(a_pad, ((0, n_pad - N), (0, n_pad - N)))

    vmem_limit = 32 * 1024 * 1024   # identical scoped budget on v5e/v6e/v7x

    # --- projection: h = x @ W^T + b  (bf16 in, f32 acc, bf16 out) ----------
    h = pl.pallas_call(
        _project_kernel,
        out_shape=jax.ShapeDtypeStruct((n_pad, dout_pad), jnp.bfloat16),
        grid_spec=pltpu.PrefetchScalarGridSpec(
            num_scalar_prefetch=0,
            grid=(n_pad // t_m,),
            in_specs=[
                pl.BlockSpec((t_m, dim_in), lambda i: (i, 0)),        # x row-tile
                pl.BlockSpec((dim_in, dout_pad), lambda i: (0, 0)),   # W^T (bf16)
                pl.BlockSpec((1, dout_pad), lambda i: (0, 0)),        # bias
            ],
            out_specs=pl.BlockSpec((t_m, dout_pad), lambda i: (i, 0)),
        ),
        compiler_params=pltpu.CompilerParams(
            dimension_semantics=("parallel",),
            vmem_limit_bytes=vmem_limit,
        ),
    )(x_pad, wt_pad, b_pad)

    # --- aggregation: out = A @ h -------------------------------------------
    h_bytes = n_pad * dout_pad * 2
    h_resident = h_bytes <= h_resident_budget_bytes

    a_item = jnp.dtype(adjacency_dtype).itemsize
    h_read = h_bytes if h_resident else (n_pad // t_m) * n_pad * dout_pad * 2
    cost = pl.CostEstimate(
        flops=2 * n_pad * n_pad * dout_pad,
        transcendentals=0,
        bytes_accessed=n_pad * n_pad * a_item
        + h_read
        + n_pad * dout_pad * jnp.dtype(out_dtype).itemsize,
    )

    if h_resident:
        # h DMA'd once (block index never changes), sliced in-kernel per k.
        h_spec = pl.BlockSpec((n_pad, dout_pad), lambda i, k: (0, 0))
    else:
        h_spec = pl.BlockSpec((t_k, dout_pad), lambda i, k: (k, 0))

    kernel = functools.partial(_aggregate_kernel, t_k=t_k, h_resident=h_resident)

    out_pad = pl.pallas_call(
        kernel,
        out_shape=jax.ShapeDtypeStruct((n_pad, dout_pad), out_dtype),
        grid_spec=pltpu.PrefetchScalarGridSpec(
            num_scalar_prefetch=0,
            grid=(n_pad // t_m, n_pad // t_k),    # (row tile, contraction) - K last
            in_specs=[
                pl.BlockSpec((t_m, t_k), lambda i, k: (i, k)),  # A tile (int8)
                h_spec,                                          # h (bf16)
            ],
            out_specs=pl.BlockSpec((t_m, dout_pad), lambda i, k: (i, 0)),
            scratch_shapes=[pltpu.VMEM((t_m, dout_pad), jnp.float32)],
        ),
        compiler_params=pltpu.CompilerParams(
            dimension_semantics=("parallel", "arbitrary"),
            vmem_limit_bytes=vmem_limit,
        ),
        cost_estimate=cost,
    )(a_pad, h)

    return out_pad[:N, :dim_out]


if __name__ == "__main__":
    # Small GNN: N=384 nodes, dim_in=64, dim_out=96.  Exercises row/K tiling
    # (N pads to 512 -> 2 row tiles x 1 K tile), lane padding (dout -> 128),
    # int8 adjacency streaming and the resident-h path.
    N, dim_in, dim_out = 384, 64, 96

    key = jax.random.PRNGKey(0)
    kx, ka, kw, kb = jax.random.split(key, 4)

    x = jax.random.normal(kx, (N, dim_in), dtype=jnp.float32)

    # Sparse-ish binary adjacency (~25% density), emitted directly as int8.
    adjacency = (jax.random.uniform(ka, (N, N)) < 0.25).astype(jnp.int8)

    # Deterministic nn.Linear-style init: U(-1/sqrt(dim_in), 1/sqrt(dim_in)).
    bound = 1.0 / np.sqrt(dim_in)
    weight = jax.random.uniform(
        kw, (dim_out, dim_in), dtype=jnp.float32, minval=-bound, maxval=bound
    )
    bias = jax.random.uniform(
        kb, (dim_out,), dtype=jnp.float32, minval=-bound, maxval=bound
    )

    gnn = jax.jit(gnn_layer)
    out = jax.block_until_ready(gnn(x, adjacency, weight, bias))

    # Pure-f32 reference of the PyTorch forward.  Tolerance reflects bf16
    # storage of x / W^T / h (error grows ~sqrt(degree); f32 acc bounds it).
    ref = adjacency.astype(jnp.float32) @ (x @ weight.T + bias)
    np.testing.assert_allclose(np.asarray(out), np.asarray(ref), rtol=2e-2, atol=2e-1)

    print("KERNEL_OK")
</pallas_src>

<mosaic_0001>
module attributes {stable_mosaic.version = 11 : i64} {
  func.func @_project_kernel(%arg0: i32, %arg1: memref<256x64xbf16, #tpu.memory_space<vmem>>, %arg2: memref<64x128xbf16, #tpu.memory_space<vmem>>, %arg3: memref<1x128xf32, #tpu.memory_space<vmem>>, %arg4: memref<256x128xbf16, #tpu.memory_space<vmem>>) attributes {dimension_semantics = [#tpu.dimension_semantics<parallel>], iteration_bounds = array<i64: 2>, scalar_prefetch = 0 : i64, scratch_operands = 0 : i64, tpu.core_type = #tpu.core_type<tc>, window_params = [{transform_indices = @transform_0, window_bounds = array<i64: 256, 64>}, {pipeline_mode = #tpu.pipeline_mode<synchronous>, transform_indices = @transform_1, window_bounds = array<i64: 64, 128>}, {pipeline_mode = #tpu.pipeline_mode<synchronous>, transform_indices = @transform_2, window_bounds = array<i64: 1, 128>}, {transform_indices = @transform_3, window_bounds = array<i64: 256, 128>}]} {
    %c0 = arith.constant 0 : index
    %c0_0 = arith.constant 0 : index
    %0 = vector.load %arg1[%c0, %c0_0] : memref<256x64xbf16, #tpu.memory_space<vmem>>, vector<256x64xbf16>
    %c0_1 = arith.constant 0 : index
    %c0_2 = arith.constant 0 : index
    %1 = vector.load %arg2[%c0_1, %c0_2] : memref<64x128xbf16, #tpu.memory_space<vmem>>, vector<64x128xbf16>
    %cst = arith.constant dense<0.000000e+00> : vector<256x128xf32>
    %2 = tpu.matmul %0, %1, %cst {dimension_numbers = #tpu.dot_dimension_numbers<[1], [0], [0], [1], [0, 0, 1, 1], [], []>} : vector<256x64xbf16>, vector<64x128xbf16>, vector<256x128xf32> -> vector<256x128xf32>
    %c0_3 = arith.constant 0 : index
    %c0_4 = arith.constant 0 : index
    %3 = vector.load %arg3[%c0_3, %c0_4] : memref<1x128xf32, #tpu.memory_space<vmem>>, vector<1x128xf32>
    %4 = vector.broadcast %3 : vector<1x128xf32> to vector<256x128xf32>
    %5 = arith.addf %2, %4 : vector<256x128xf32>
    %6 = arith.truncf %5 : vector<256x128xf32> to vector<256x128xbf16>
    %c0_5 = arith.constant 0 : index
    %c0_6 = arith.constant 0 : index
    %7 = vector.load %arg4[%c0_5, %c0_6] : memref<256x128xbf16, #tpu.memory_space<vmem>>, vector<256x128xbf16>
    tpu.vector_store %arg4[%c0_5, %c0_6], %6 {strides = array<i32>} : memref<256x128xbf16, #tpu.memory_space<vmem>>, vector<256x128xbf16>,
    return
  }
  func.func @transform_0(%arg0: i32) -> (i32, i32) {
    %c0_i32 = arith.constant 0 : i32
    %c0_i32_0 = arith.constant 0 : i32
    return %arg0, %c0_i32 : i32, i32
  }
  func.func @transform_1(%arg0: i32) -> (i32, i32) {
    %c0_i32 = arith.constant 0 : i32
    %c0_i32_0 = arith.constant 0 : i32
    %c0_i32_1 = arith.constant 0 : i32
    return %c0_i32, %c0_i32_0 : i32, i32
  }
  func.func @transform_2(%arg0: i32) -> (i32, i32) {
    %c0_i32 = arith.constant 0 : i32
    %c0_i32_0 = arith.constant 0 : i32
    %c0_i32_1 = arith.constant 0 : i32
    return %c0_i32, %c0_i32_0 : i32, i32
  }
  func.func @transform_3(%arg0: i32) -> (i32, i32) {
    %c0_i32 = arith.constant 0 : i32
    %c0_i32_0 = arith.constant 0 : i32
    return %arg0, %c0_i32 : i32, i32
  }
}

module attributes {stable_mosaic.version = 11 : i64} {
  func.func @_aggregate_kernel(%arg0: i32, %arg1: i32, %arg2: memref<256x512xi8, #tpu.memory_space<vmem>>, %arg3: memref<512x128xbf16, #tpu.memory_space<vmem>>, %arg4: memref<256x128xf32, #tpu.memory_space<vmem>>, %arg5: memref<256x128xf32, #tpu.memory_space<vmem>>) attributes {dimension_semantics = [#tpu.dimension_semantics<parallel>, #tpu.dimension_semantics<arbitrary>], iteration_bounds = array<i64: 2, 1>, scalar_prefetch = 0 : i64, scratch_operands = 1 : i64, tpu.core_type = #tpu.core_type<tc>, window_params = [{transform_indices = @transform_0, window_bounds = array<i64: 256, 512>}, {pipeline_mode = #tpu.pipeline_mode<synchronous>, transform_indices = @transform_1, window_bounds = array<i64: 512, 128>}, {transform_indices = @transform_2, window_bounds = array<i64: 256, 128>}]} {
    %c0_i32 = arith.constant 0 : i32
    %0 = arith.cmpi eq, %arg1, %c0_i32 : i32
    %1 = arith.extui %0 : i1 to i32
    %c0_i32_0 = arith.constant 0 : i32
    %2 = arith.cmpi ne, %1, %c0_i32_0 : i32
    scf.if %2 {
      %cst_9 = arith.constant 0.000000e+00 : f32
      %16 = vector.broadcast %cst_9 : f32 to vector<256x128xf32>
      %c0_10 = arith.constant 0 : index
      %c0_11 = arith.constant 0 : index
      %17 = vector.load %arg5[%c0_10, %c0_11] : memref<256x128xf32, #tpu.memory_space<vmem>>, vector<256x128xf32>
      tpu.vector_store %arg5[%c0_10, %c0_11], %16 {strides = array<i32>} : memref<256x128xf32, #tpu.memory_space<vmem>>, vector<256x128xf32>,
    } else {
    }
    %c0 = arith.constant 0 : index
    %c0_1 = arith.constant 0 : index
    %3 = vector.load %arg2[%c0, %c0_1] : memref<256x512xi8, #tpu.memory_space<vmem>>, vector<256x512xi8>
    %4 = arith.sitofp %3 : vector<256x512xi8> to vector<256x512xbf16>
    %c512_i32 = arith.constant 512 : i32
    %5 = arith.muli %arg1, %c512_i32 : i32
    %6 = tpu.assume_multiple %5, 512 : i32
    %7 = arith.index_cast %6 : i32 to index
    %c0_2 = arith.constant 0 : index
    %8 = vector.load %arg3[%7, %c0_2] : memref<512x128xbf16, #tpu.memory_space<vmem>>, vector<512x128xbf16>
    %c0_3 = arith.constant 0 : index
    %c0_4 = arith.constant 0 : index
    %9 = vector.load %arg5[%c0_3, %c0_4] : memref<256x128xf32, #tpu.memory_space<vmem>>, vector<256x128xf32>
    %cst = arith.constant dense<0.000000e+00> : vector<256x128xf32>
    %10 = tpu.matmul %4, %8, %cst {dimension_numbers = #tpu.dot_dimension_numbers<[1], [0], [0], [1], [0, 0, 1, 1], [], []>} : vector<256x512xbf16>, vector<512x128xbf16>, vector<256x128xf32> -> vector<256x128xf32>
    %11 = arith.addf %9, %10 : vector<256x128xf32>
    %c0_5 = arith.constant 0 : index
    %c0_6 = arith.constant 0 : index
    %12 = vector.load %arg5[%c0_5, %c0_6] : memref<256x128xf32, #tpu.memory_space<vmem>>, vector<256x128xf32>
    tpu.vector_store %arg5[%c0_5, %c0_6], %11 {strides = array<i32>} : memref<256x128xf32, #tpu.memory_space<vmem>>, vector<256x128xf32>,
    %c0_i32_7 = arith.constant 0 : i32
    %13 = arith.cmpi eq, %arg1, %c0_i32_7 : i32
    %14 = arith.extui %13 : i1 to i32
    %c0_i32_8 = arith.constant 0 : i32
    %15 = arith.cmpi ne, %14, %c0_i32_8 : i32
    scf.if %15 {
      %c0_9 = arith.constant 0 : index
      %c0_10 = arith.constant 0 : index
      %16 = vector.load %arg5[%c0_9, %c0_10] : memref<256x128xf32, #tpu.memory_space<vmem>>, vector<256x128xf32>
      %c0_11 = arith.constant 0 : index
      %c0_12 = arith.constant 0 : index
      %17 = vector.load %arg4[%c0_11, %c0_12] : memref<256x128xf32, #tpu.memory_space<vmem>>, vector<256x128xf32>
      tpu.vector_store %arg4[%c0_11, %c0_12], %16 {strides = array<i32>} : memref<256x128xf32, #tpu.memory_space<vmem>>, vector<256x128xf32>,
    } else {
    }
    return
  }
  func.func @transform_0(%arg0: i32, %arg1: i32) -> (i32, i32) {
    %c0_i32 = arith.constant 0 : i32
    return %arg0, %arg1 : i32, i32
  }
  func.func @transform_1(%arg0: i32, %arg1: i32) -> (i32, i32) {
    %c0_i32 = arith.constant 0 : i32
    %c0_i32_0 = arith.constant 0 : i32
    %c0_i32_1 = arith.constant 0 : i32
    return %c0_i32, %c0_i32_0 : i32, i32
  }
  func.func @transform_2(%arg0: i32, %arg1: i32) -> (i32, i32) {
    %c0_i32 = arith.constant 0 : i32
    %c0_i32_0 = arith.constant 0 : i32
    return %arg0, %c0_i32 : i32, i32
  }
}

</mosaic_0001>

<llo_original>
// kernel: gnn_layer.2
$region0: #{gnn_layer.2}
  #allocation0 [shape = 'u32[]', space=smem, size = 0x4, offset = 0x4, fixed_abs, tag = 'smem constant byte address 0x4 - core index']
  #allocation1 [shape = 'u32[72,128]{1,0:T(1,128)}', space=vmem, size = 0x9000, scoped, tag = 'internal scratch']
  %s0 = inlined_call_operand.vmem [shape: bf16[512,64], index: 0, kind: input, shape index: {}]
  %s1 = inlined_call_operand.vmem [shape: bf16[64,128], index: 1, kind: input, shape index: {}]
  %s2 = inlined_call_operand.vmem [shape: f32[1,128], index: 2, kind: input, shape index: {}]
  %s3 = inlined_call_operand.vmem [shape: bf16[512,128], index: 3, kind: output, shape index: {}]
  %s4 = sld [smem:[#allocation0]]
  $region45: #{gnn_layer.2} parent=0
    _
  %s6 = ssub.s32 1, %s4
  %s7 = scalar_select 0, %s6, %s4
  loop: start=0, step=1, limit=4
  $region2: #{gnn_layer.2} parent=0 // loop_pre_header
    _
  $region3: #{gnn_layer.2} parent=0 // loop_header
    %s9 = sphi 0, %s13
    %p10 = scmp.ge.s32.totalorder %s9, 4
    %s19 = sphi 0, %s21
    %s22 = sphi 0, %s19
    %s23 = sphi 0, %s22
    %s39 = sphi 0, %s23
    %s43 = sphi 0, %s43
    %s45 = sphi 0, %s43
    %s46 = sphi 0, %s45
    %s60 = sphi 0, %s46
    %s64 = sphi 0, %s64
    %s66 = sphi 0, %s64
    %s67 = sphi 0, %s66
    %s81 = sphi 0, %s67
    %s87 = sphi 0, %s89
    %s90 = sphi 0, %s87
    %s91 = sphi 0, %s90
    %s107 = sphi 0, %s91
  $region4: #{gnn_layer.2} parent=0 // loop_header_branch
    %12 = sbr.rel (%p10) target = $region8
  $region5: #{gnn_layer.2} parent=0 // loop_body
    %s14 = ssub.s32 %s9, 1
    %s15 = ssub.s32 %s9, 2
    %s16 = sadd.s32 %s9, 1
    %s17 = ssub.s32 %s9, %s16
    %p18 = scmp.eq.s32.totalorder %s17, 0
    %s20 = sadd.s32 %s19, 1
    %s21 = scalar_select %p18, %s19, %s20
    %p24 = pneg %p18
    %p25 = scmp.eq.s32.totalorder %s9, 1
    %p26 = por %p24, %p25
    %p27 = scmp.ne.s32.totalorder %s19, %s22
    %p28 = scmp.eq.s32.totalorder %s9, 0
    %p29 = por %p27, %p28
    %p30 = scmp.ne.s32.totalorder %s19, %s22
    %p31 = scmp.eq.s32.totalorder %s14, 1
    %p32 = por %p30, %p31
    %p33 = scmp.ne.s32.totalorder %s22, %s23
    %p34 = scmp.eq.s32.totalorder %s14, 0
    %p35 = por %p33, %p34
    %p36 = scmp.ne.s32.totalorder %s22, %s23
    %p37 = scmp.eq.s32.totalorder %s15, 1
    %p38 = por %p36, %p37
    %p40 = scmp.ne.s32.totalorder %s23, %s39
    %p41 = scmp.eq.s32.totalorder %s15, 0
    %p42 = por %p40, %p41
    %s44 = sadd.s32 %s43, 1
    %p47 = scmp.eq.s32.totalorder %s9, 1
    %p48 = scmp.ne.s32.totalorder %s43, %s45
    %p49 = scmp.eq.s32.totalorder %s9, 0
    %p50 = por %p48, %p49
    %p51 = scmp.ne.s32.totalorder %s43, %s45
    %p52 = scmp.eq.s32.totalorder %s14, 1
    %p53 = por %p51, %p52
    %p54 = scmp.ne.s32.totalorder %s45, %s46
    %p55 = scmp.eq.s32.totalorder %s14, 0
    %p56 = por %p54, %p55
    %p57 = scmp.ne.s32.totalorder %s45, %s46
    %p58 = scmp.eq.s32.totalorder %s15, 1
    %p59 = por %p57, %p58
    %p61 = scmp.ne.s32.totalorder %s46, %s60
    %p62 = scmp.eq.s32.totalorder %s15, 0
    %p63 = por %p61, %p62
    %s65 = sadd.s32 %s64, 1
    %p68 = scmp.eq.s32.totalorder %s9, 1
    %p69 = scmp.ne.s32.totalorder %s64, %s66
    %p70 = scmp.eq.s32.totalorder %s9, 0
    %p71 = por %p69, %p70
    %p72 = scmp.ne.s32.totalorder %s64, %s66
    %p73 = scmp.eq.s32.totalorder %s14, 1
    %p74 = por %p72, %p73
    %p75 = scmp.ne.s32.totalorder %s66, %s67
    %p76 = scmp.eq.s32.totalorder %s14, 0
    %p77 = por %p75, %p76
    %p78 = scmp.ne.s32.totalorder %s66, %s67
    %p79 = scmp.eq.s32.totalorder %s15, 1
    %p80 = por %p78, %p79
    %p82 = scmp.ne.s32.totalorder %s67, %s81
    %p83 = scmp.eq.s32.totalorder %s15, 0
    %p84 = por %p82, %p83
    %s85 = ssub.s32 %s9, %s16
    %p86 = scmp.eq.s32.totalorder %s85, 0
    %s88 = sadd.s32 %s87, 1
    %s89 = scalar_select %p86, %s87, %s88
    %p92 = pneg %p86
    %p93 = scmp.eq.s32.totalorder %s9, 1
    %p94 = por %p92, %p93
    %p95 = scmp.ne.s32.totalorder %s87, %s90
    %p96 = scmp.eq.s32.totalorder %s9, 0
    %p97 = por %p95, %p96
    %p98 = scmp.ne.s32.totalorder %s87, %s90
    %p99 = scmp.eq.s32.totalorder %s14, 1
    %p100 = por %p98, %p99
    %p101 = scmp.ne.s32.totalorder %s90, %s91
    %p102 = scmp.eq.s32.totalorder %s14, 0
    %p103 = por %p101, %p102
    %p104 = scmp.ne.s32.totalorder %s90, %s91
    %p105 = scmp.eq.s32.totalorder %s15, 1
    %p106 = por %p104, %p105
    %p108 = scmp.ne.s32.totalorder %s91, %s107
    %p109 = scmp.eq.s32.totalorder %s15, 0
    %p110 = por %p108, %p109
    %p111 = scmp.le.s32.totalorder 1, %s9
    %p112 = scmp.lt.s32.totalorder %s9, 3
    %p113 = pnand %p111, %p112
    %p114 = pneg %p113
    // Predicated region
    $region9: #{gnn_layer.2} parent=5 // pred_check
      _
    $region10: #{gnn_layer.2} parent=5 // pred_check_branch
      %116 = sbr.rel (%p113) target = $region12
    $region11: #{gnn_layer.2} parent=5 // pred_region
      %s117 = ssub.s32 %s9, 1
      // Predicated region
      $region13: #{gnn_layer.2} parent=11 // pred_check
        %p118 = pneg %p56
      $region14: #{gnn_layer.2} parent=11 // pred_check_branch
        %120 = sbr.rel (%p118) target = $region16
      $region15: #{gnn_layer.2} parent=11 // pred_region
        _
      $region16: #{gnn_layer.2} parent=11 // pred_fallthru
        _
      // Predicated region
      $region17: #{gnn_layer.2} parent=11 // pred_check
        %p121 = pneg %p77
      $region18: #{gnn_layer.2} parent=11 // pred_check_branch
        %123 = sbr.rel (%p121) target = $region20
      $region19: #{gnn_layer.2} parent=11 // pred_region
        _
      $region20: #{gnn_layer.2} parent=11 // pred_fallthru
        _
    $region12: #{gnn_layer.2} parent=5 // pred_fallthru
      _
    %p124 = scmp.lt.s32.totalorder %s9, 2
    // Predicated region
    $region21: #{gnn_layer.2} parent=5 // pred_check
      %p125 = pneg %p124
    $region22: #{gnn_layer.2} parent=5 // pred_check_branch
      %127 = sbr.rel (%p125) target = $region24
    $region23: #{gnn_layer.2} parent=5 // pred_region
      // Predicated region
      $region25: #{gnn_layer.2} parent=23 // pred_check
        %p128 = pneg %p29
      $region26: #{gnn_layer.2} parent=23 // pred_check_branch
        %130 = sbr.rel (%p128) target = $region28
      $region27: #{gnn_layer.2} parent=23 // pred_region
        %s131 = smul.u32 32, %s9
        %p132 = scmp.lt.s32.totalorder %s131, 63
        %s133 = scalar_select %p132, %s131, 63
        %s134 = smul.addr %s133, 4
        %s135 = scalar_lea.vmem %s0, %s134
        %s136 = smul.u32 32, %s9
      $region28: #{gnn_layer.2} parent=23 // pred_fallthru
        _
    $region24: #{gnn_layer.2} parent=5 // pred_fallthru
      _
    %p137 = scmp.le.s32.totalorder 1, %s9
    %p138 = scmp.lt.s32.totalorder %s9, 3
    %p139 = pnand %p137, %p138
    %p140 = pneg %p139
    // Predicated region
    $region29: #{gnn_layer.2} parent=5 // pred_check
      _
    $region30: #{gnn_layer.2} parent=5 // pred_check_branch
      %142 = sbr.rel (%p139) target = $region32
    $region31: #{gnn_layer.2} parent=5 // pred_region
      %s143 = ssub.s32 %s9, 1
      %s144 = smul.u32 32, %s14
      %p145 = scmp.lt.s32.totalorder %s144, 63
      %s146 = scalar_select %p145, %s144, 63
      %s147 = smul.addr %s146, 4
      %s148 = scalar_lea.vmem %s0, %s147
      %p149 = pneg %p35
      %p150 = pneg %p32
      %p151 = pneg %p56
      %p152 = pneg %p53
      %p153 = pneg %p77
      %p154 = pneg %p74
      %p155 = pneg %p103
      %p156 = pneg %p100
      %s157 = smul.u32 32, %s14
      %p158 = scmp.lt.s32.totalorder %s157, 63
      %s159 = scalar_select %p158, %s157, 63
      %s160 = smul.addr %s159, 4
      %s161 = scalar_lea.vmem %s3, %s160
      %s162 = smul.u32 32, %s14
      %p163 = scmp.lt.s32.totalorder %s162, 63
      %s164 = scalar_select %p163, %s162, 63
      %s165 = smul.addr %s164, 4
      %s166 = scalar_lea.vmem %s0, %s165
      %s167 = smul.u32 32, %s14
      %s168 = smul.u32 32, %s14
      %p169 = scmp.lt.s32.totalorder %s168, 63
      %s170 = scalar_select %p169, %s168, 63
      %s171 = smul.addr %s170, 4
      %s172 = scalar_lea.vmem %s3, %s171
      %s173 = smul.u32 32, %s14
      %v175 = vld [vmem:[%s166] sm:$0xf]
      %v176 = vld [vmem:[%s166 + $0x4] sm:$0xf]
      %v177 = vld [vmem:[%s166 + $0x8] sm:$0xf]
      %v178 = vld [vmem:[%s166 + $0xc] sm:$0xf]
      %v179 = vld [vmem:[%s166 + $0x10] sm:$0xf]
      %v180 = vld [vmem:[%s166 + $0x14] sm:$0xf]
      %v181 = vld [vmem:[%s166 + $0x18] sm:$0xf]
      %v182 = vld [vmem:[%s166 + $0x1c] sm:$0xf]
      %v183 = vld [vmem:[%s166 + $0x20] sm:$0xf]
      %v184 = vld [vmem:[%s166 + $0x24] sm:$0xf]
      %v185 = vld [vmem:[%s166 + $0x28] sm:$0xf]
      %v186 = vld [vmem:[%s166 + $0x2c] sm:$0xf]
      %v187 = vld [vmem:[%s166 + $0x30] sm:$0xf]
      %v188 = vld [vmem:[%s166 + $0x34] sm:$0xf]
      %v189 = vld [vmem:[%s166 + $0x38] sm:$0xf]
      %v190 = vld [vmem:[%s166 + $0x3c] sm:$0xf]
      %v191 = vld [vmem:[%s166 + $0x40] sm:$0xf]
      %v192 = vld [vmem:[%s166 + $0x44] sm:$0xf]
      %v193 = vld [vmem:[%s166 + $0x48] sm:$0xf]
      %v194 = vld [vmem:[%s166 + $0x4c] sm:$0xf]
      %v195 = vld [vmem:[%s166 + $0x50] sm:$0xf]
      %v196 = vld [vmem:[%s166 + $0x54] sm:$0xf]
      %v197 = vld [vmem:[%s166 + $0x58] sm:$0xf]
      %v198 = vld [vmem:[%s166 + $0x5c] sm:$0xf]
      %v199 = vld [vmem:[%s166 + $0x60] sm:$0xf]
      %v200 = vld [vmem:[%s166 + $0x64] sm:$0xf]
      %v201 = vld [vmem:[%s166 + $0x68] sm:$0xf]
      %v202 = vld [vmem:[%s166 + $0x6c] sm:$0xf]
      %v203 = vld [vmem:[%s166 + $0x70] sm:$0xf]
      %v204 = vld [vmem:[%s166 + $0x74] sm:$0xf]
      %v205 = vld [vmem:[%s166 + $0x78] sm:$0xf]
      %v206 = vld [vmem:[%s166 + $0x7c] sm:$0xf]
      %v207 = vld [vmem:[%s1] sm:$0xf]
      %v208 = vld [vmem:[%s1 + $0x4] sm:$0xf]
      %v209 = vld [vmem:[%s1 + $0x8] sm:$0xf]
      %v210 = vld [vmem:[%s1 + $0xc] sm:$0xf]
      %v211 = vld [vmem:[%s1 + $0x10] sm:$0xf]
      %v212 = vld [vmem:[%s1 + $0x14] sm:$0xf]
      %v213 = vld [vmem:[%s1 + $0x18] sm:$0xf]
      %v214 = vld [vmem:[%s1 + $0x1c] sm:$0xf]
      %v215 = vld [vmem:[%s2] sm:$0x1]
      %v217 = vperm.slane %v215, 0
      %v251 = vunpack.c.l.b16 %v175
      %v252 = vunpack.c.l.b16 %v176
      %v253 = vunpack.c.l.b16 %v177
      %v254 = vunpack.c.l.b16 %v178
      %v255 = vunpack.c.l.b16 %v179
      %v256 = vunpack.c.l.b16 %v180
      %v257 = vunpack.c.l.b16 %v181
      %v258 = vunpack.c.l.b16 %v182
      %v259 = vunpack.c.l.b16 %v183
      %v260 = vunpack.c.l.b16 %v184
      %v261 = vunpack.c.l.b16 %v185
      %v262 = vunpack.c.l.b16 %v186
      %v263 = vunpack.c.l.b16 %v187
      %v264 = vunpack.c.l.b16 %v188
      %v265 = vunpack.c.l.b16 %v189
      %v266 = vunpack.c.l.b16 %v190
      %v267 = vunpack.c.l.b16 %v191
      %v268 = vunpack.c.l.b16 %v192
      %v269 = vunpack.c.l.b16 %v193
      %v270 = vunpack.c.l.b16 %v194
      %v271 = vunpack.c.l.b16 %v195
      %v272 = vunpack.c.l.b16 %v196
      %v273 = vunpack.c.l.b16 %v197
      %v274 = vunpack.c.l.b16 %v198
      %v275 = vunpack.c.l.b16 %v199
      %v276 = vunpack.c.l.b16 %v200
      %v277 = vunpack.c.l.b16 %v201
      %v278 = vunpack.c.l.b16 %v202
      %v279 = vunpack.c.l.b16 %v203
      %v280 = vunpack.c.l.b16 %v204
      %v281 = vunpack.c.l.b16 %v205
      %v282 = vunpack.c.l.b16 %v206
      %v283 = vpack.c.b16 %v252, %v251
      %v284 = vpack.c.b16 %v254, %v253
      %v285 = vpack.c.b16 %v256, %v255
      %v286 = vpack.c.b16 %v258, %v257
      %v287 = vpack.c.b16 %v260, %v259
      %v288 = vpack.c.b16 %v262, %v261
      %v289 = vpack.c.b16 %v264, %v263
      %v290 = vpack.c.b16 %v266, %v265
      %v291 = vpack.c.b16 %v268, %v267
      %v292 = vpack.c.b16 %v270, %v269
      %v293 = vpack.c.b16 %v272, %v271
      %v294 = vpack.c.b16 %v274, %v273
      %v295 = vpack.c.b16 %v276, %v275
      %v296 = vpack.c.b16 %v278, %v277
      %v297 = vpack.c.b16 %v280, %v279
      %v298 = vpack.c.b16 %v282, %v281
      %v307 = vunpack.c.l.b16 %v207
      %v308 = vunpack.c.l.b16 %v208
      %v309 = vunpack.c.l.b16 %v209
      %v310 = vunpack.c.l.b16 %v210
      %v311 = vunpack.c.l.b16 %v211
      %v312 = vunpack.c.l.b16 %v212
      %v313 = vunpack.c.l.b16 %v213
      %v314 = vunpack.c.l.b16 %v214
      %v315 = vpack.c.b16 %v308, %v307
      %v316 = vpack.c.b16 %v310, %v309
      %v317 = vpack.c.b16 %v312, %v311
      %v318 = vpack.c.b16 %v314, %v313
      %vm323 = vcmask 523264
      %v325 = vsel %vm323, %v283, 0
      %v328 = vsel %vm323, %v284, 0
      %v331 = vsel %vm323, %v285, 0
      %v334 = vsel %vm323, %v286, 0
      %v337 = vsel %vm323, %v287, 0
      %v340 = vsel %vm323, %v288, 0
      %v343 = vsel %vm323, %v289, 0
      %v346 = vsel %vm323, %v290, 0
      %v349 = vsel %vm323, %v291, 0
      %v352 = vsel %vm323, %v292, 0
      %v355 = vsel %vm323, %v293, 0
      %v358 = vsel %vm323, %v294, 0
      %v361 = vsel %vm323, %v295, 0
      %v364 = vsel %vm323, %v296, 0
      %v367 = vsel %vm323, %v297, 0
      %v370 = vsel %vm323, %v298, 0
      %372 = vmatpush.bf16.msra.mxu0 0
      %373 = vmatpush.bf16.msra.mxu0 0
      %374 = vmatpush.bf16.msra.mxu0 0
      %375 = vmatpush.bf16.msra.mxu0 0
      %376 = vmatpush.bf16.msra.mxu0 %v318
      %377 = vmatpush.bf16.msra.mxu0 %v317
      %378 = vmatpush.bf16.msra.mxu0 %v316
      %379 = vmatpush.bf16.msra.mxu0 %v315
      %380 = vmatmul.bf16.gmra.mxu0 %v325
      %v381 = vpop.f32.mrf.mxu0
      %v382 = vadd.f32 %v217, %v381
      %v383 = vpop.f32.mrf.mxu0
      %v384 = vadd.f32 %v217, %v383
      %385 = vmatmul.bf16.gmra.mxu0 %v328
      %v386 = vpop.f32.mrf.mxu0
      %v387 = vadd.f32 %v217, %v386
      %v388 = vpop.f32.mrf.mxu0
      %v389 = vadd.f32 %v217, %v388
      %390 = vmatmul.bf16.gmra.mxu0 %v331
      %v391 = vpop.f32.mrf.mxu0
      %v392 = vadd.f32 %v217, %v391
      %v393 = vpop.f32.mrf.mxu0
      %v394 = vadd.f32 %v217, %v393
      %395 = vmatmul.bf16.gmra.mxu0 %v334
      %v396 = vpop.f32.mrf.mxu0
      %v397 = vadd.f32 %v217, %v396
      %v398 = vpop.f32.mrf.mxu0
      %v399 = vadd.f32 %v217, %v398
      %400 = vmatmul.bf16.gmra.mxu0 %v337
      %v401 = vpop.f32.mrf.mxu0
      %v402 = vadd.f32 %v217, %v401
      %v403 = vpop.f32.mrf.mxu0
      %v404 = vadd.f32 %v217, %v403
      %405 = vmatmul.bf16.gmra.mxu0 %v340
      %v406 = vpop.f32.mrf.mxu0
      %v407 = vadd.f32 %v217, %v406
      %v408 = vpop.f32.mrf.mxu0
      %v409 = vadd.f32 %v217, %v408
      %410 = vmatmul.bf16.gmra.mxu0 %v343
      %v411 = vpop.f32.mrf.mxu0
      %v412 = vadd.f32 %v217, %v411
      %v413 = vpop.f32.mrf.mxu0
      %v414 = vadd.f32 %v217, %v413
      %415 = vmatmul.bf16.gmra.mxu0 %v346
      %v416 = vpop.f32.mrf.mxu0
      %v417 = vadd.f32 %v217, %v416
      %v418 = vpop.f32.mrf.mxu0
      %v419 = vadd.f32 %v217, %v418
      %420 = vmatmul.bf16.gmra.mxu0 %v349
      %v421 = vpop.f32.mrf.mxu0
      %v422 = vadd.f32 %v217, %v421
      %v423 = vpop.f32.mrf.mxu0
      %v424 = vadd.f32 %v217, %v423
      %425 = vmatmul.bf16.gmra.mxu0 %v352
      %v426 = vpop.f32.mrf.mxu0
      %v427 = vadd.f32 %v217, %v426
      %v428 = vpop.f32.mrf.mxu0
      %v429 = vadd.f32 %v217, %v428
      %430 = vmatmul.bf16.gmra.mxu0 %v355
      %v431 = vpop.f32.mrf.mxu0
      %v432 = vadd.f32 %v217, %v431
      %v433 = vpop.f32.mrf.mxu0
      %v434 = vadd.f32 %v217, %v433
      %435 = vmatmul.bf16.gmra.mxu0 %v358
      %v436 = vpop.f32.mrf.mxu0
      %v437 = vadd.f32 %v217, %v436
      %v438 = vpop.f32.mrf.mxu0
      %v439 = vadd.f32 %v217, %v438
      %440 = vmatmul.bf16.gmra.mxu0 %v361
      %v441 = vpop.f32.mrf.mxu0
      %v442 = vadd.f32 %v217, %v441
      %v443 = vpop.f32.mrf.mxu0
      %v444 = vadd.f32 %v217, %v443
      %445 = vmatmul.bf16.gmra.mxu0 %v364
      %v446 = vpop.f32.mrf.mxu0
      %v447 = vadd.f32 %v217, %v446
      %v448 = vpop.f32.mrf.mxu0
      %v449 = vadd.f32 %v217, %v448
      %450 = vmatmul.bf16.gmra.mxu0 %v367
      %v451 = vpop.f32.mrf.mxu0
      %v452 = vadd.f32 %v217, %v451
      %v453 = vpop.f32.mrf.mxu0
      %v454 = vadd.f32 %v217, %v453
      %455 = vmatmul.bf16.gmra.mxu0 %v370
      %v456 = vpop.f32.mrf.mxu0
      %v457 = vadd.f32 %v217, %v456
      %v458 = vpop.f32.mrf.mxu0
      %v459 = vadd.f32 %v217, %v458
      %460 = vdwg.mxu0
      %v461 = vpack.c.bf16 %v382, %v382
      %v462 = vpack.c.bf16 %v384, %v384
      %v463 = vpack.c.bf16 %v387, %v387
      %v464 = vpack.c.bf16 %v389, %v389
      %v465 = vpack.c.bf16 %v392, %v392
      %v466 = vpack.c.bf16 %v394, %v394
      %v467 = vpack.c.bf16 %v397, %v397
      %v468 = vpack.c.bf16 %v399, %v399
      %v469 = vpack.c.bf16 %v402, %v402
      %v470 = vpack.c.bf16 %v404, %v404
      %v471 = vpack.c.bf16 %v407, %v407
      %v472 = vpack.c.bf16 %v409, %v409
      %v473 = vpack.c.bf16 %v412, %v412
      %v474 = vpack.c.bf16 %v414, %v414
      %v475 = vpack.c.bf16 %v417, %v417
      %v476 = vpack.c.bf16 %v419, %v419
      %v477 = vpack.c.bf16 %v422, %v422
      %v478 = vpack.c.bf16 %v424, %v424
      %v479 = vpack.c.bf16 %v427, %v427
      %v480 = vpack.c.bf16 %v429, %v429
      %v481 = vpack.c.bf16 %v432, %v432
      %v482 = vpack.c.bf16 %v434, %v434
      %v483 = vpack.c.bf16 %v437, %v437
      %v484 = vpack.c.bf16 %v439, %v439
      %v485 = vpack.c.bf16 %v442, %v442
      %v486 = vpack.c.bf16 %v444, %v444
      %v487 = vpack.c.bf16 %v447, %v447
      %v488 = vpack.c.bf16 %v449, %v449
      %v489 = vpack.c.bf16 %v452, %v452
      %v490 = vpack.c.bf16 %v454, %v454
      %v491 = vpack.c.bf16 %v457, %v457
      %v492 = vpack.c.bf16 %v459, %v459
      %493 = vst [vmem:[%s172] sm:$0xf] %v461
      %494 = vst [vmem:[%s172 + $0x4] sm:$0xf] %v462
      %495 = vst [vmem:[%s172 + $0x8] sm:$0xf] %v463
      %496 = vst [vmem:[%s172 + $0xc] sm:$0xf] %v464
      %497 = vst [vmem:[%s172 + $0x10] sm:$0xf] %v465
      %498 = vst [vmem:[%s172 + $0x14] sm:$0xf] %v466
      %499 = vst [vmem:[%s172 + $0x18] sm:$0xf] %v467
      %500 = vst [vmem:[%s172 + $0x1c] sm:$0xf] %v468
      %501 = vst [vmem:[%s172 + $0x20] sm:$0xf] %v469
      %502 = vst [vmem:[%s172 + $0x24] sm:$0xf] %v470
      %503 = vst [vmem:[%s172 + $0x28] sm:$0xf] %v471
      %504 = vst [vmem:[%s172 + $0x2c] sm:$0xf] %v472
      %505 = vst [vmem:[%s172 + $0x30] sm:$0xf] %v473
      %506 = vst [vmem:[%s172 + $0x34] sm:$0xf] %v474
      %507 = vst [vmem:[%s172 + $0x38] sm:$0xf] %v475
      %508 = vst [vmem:[%s172 + $0x3c] sm:$0xf] %v476
      %509 = vst [vmem:[%s172 + $0x40] sm:$0xf] %v477
      %510 = vst [vmem:[%s172 + $0x44] sm:$0xf] %v478
      %511 = vst [vmem:[%s172 + $0x48] sm:$0xf] %v479
      %512 = vst [vmem:[%s172 + $0x4c] sm:$0xf] %v480
      %513 = vst [vmem:[%s172 + $0x50] sm:$0xf] %v481
      %514 = vst [vmem:[%s172 + $0x54] sm:$0xf] %v482
      %515 = vst [vmem:[%s172 + $0x58] sm:$0xf] %v483
      %516 = vst [vmem:[%s172 + $0x5c] sm:$0xf] %v484
      %517 = vst [vmem:[%s172 + $0x60] sm:$0xf] %v485
      %518 = vst [vmem:[%s172 + $0x64] sm:$0xf] %v486
      %519 = vst [vmem:[%s172 + $0x68] sm:$0xf] %v487
      %520 = vst [vmem:[%s172 + $0x6c] sm:$0xf] %v488
      %521 = vst [vmem:[%s172 + $0x70] sm:$0xf] %v489
      %522 = vst [vmem:[%s172 + $0x74] sm:$0xf] %v490
      %523 = vst [vmem:[%s172 + $0x78] sm:$0xf] %v491
      %524 = vst [vmem:[%s172 + $0x7c] sm:$0xf] %v492
      %s525 = smul.u32 32, %s14
      %p526 = scmp.lt.s32.totalorder %s525, 63
      %s527 = scalar_select %p526, %s525, 63
      %s528 = smul.addr %s527, 4
      %s529 = scalar_lea.vmem %s3, %s528
      // Predicated region
      $region33: #{gnn_layer.2} parent=31 // pred_check
        %p530 = pneg %p100
      $region34: #{gnn_layer.2} parent=31 // pred_check_branch
        %532 = sbr.rel (%p530) target = $region36
      $region35: #{gnn_layer.2} parent=31 // pred_region
        %s533 = smul.u32 32, %s14
      $region36: #{gnn_layer.2} parent=31 // pred_fallthru
        _
    $region32: #{gnn_layer.2} parent=5 // pred_fallthru
      _
    %p534 = scmp.le.s32.totalorder 2, %s9
    // Predicated region
    $region37: #{gnn_layer.2} parent=5 // pred_check
      %p535 = pneg %p534
    $region38: #{gnn_layer.2} parent=5 // pred_check_branch
      %537 = sbr.rel (%p535) target = $region40
    $region39: #{gnn_layer.2} parent=5 // pred_region
      %s538 = ssub.s32 %s9, 2
      // Predicated region
      $region41: #{gnn_layer.2} parent=39 // pred_check
        %p539 = pneg %p106
      $region42: #{gnn_layer.2} parent=39 // pred_check_branch
        %541 = sbr.rel (%p539) target = $region44
      $region43: #{gnn_layer.2} parent=39 // pred_region
        %s542 = smul.u32 32, %s15
        %p543 = scmp.lt.s32.totalorder %s542, 63
        %s544 = scalar_select %p543, %s542, 63
        %s545 = smul.addr %s544, 4
        %s546 = scalar_lea.vmem %s3, %s545
      $region44: #{gnn_layer.2} parent=39 // pred_fallthru
        _
    $region40: #{gnn_layer.2} parent=5 // pred_fallthru
      _
  $region6: #{gnn_layer.2} parent=0 // loop_footer
    %s13 = sadd.s32 1, %s9
  $region7: #{gnn_layer.2} parent=0 // loop_footer_branch
    %8 = sbr.rel target = $region3
  $region8: #{gnn_layer.2} parent=0 // loop_exit
    _

// kernel: gnn_layer.3
$region0: #{gnn_layer.3}
  #allocation0 [shape = 'u32[]', space=smem, size = 0x4, offset = 0x4, fixed_abs, tag = 'smem constant byte address 0x4 - core index']
  #allocation1 [shape = 'u32[72,128]{1,0:T(1,128)}', space=vmem, size = 0x9000, scoped, tag = 'internal scratch']
  #allocation2 [shape = 'f32[256,128]{1,0:T(8,128)}', space=vmem, size = 0x20000, scoped, tag = 'scratch operand']
  %s0 = inlined_call_operand.vmem [shape: s8[512,512], index: 0, kind: input, shape index: {}]
  %s1 = inlined_call_operand.vmem [shape: bf16[512,128], index: 1, kind: input, shape index: {}]
  %s2 = inlined_call_operand.vmem [shape: f32[512,128], index: 2, kind: output, shape index: {}]
  %s3 = sld [smem:[#allocation0]]
  $region49: #{gnn_layer.3} parent=0
    _
  %s5 = ssub.s32 1, %s3
  %s6 = scalar_select 0, %s5, %s3
  loop: start=0, step=1, limit=4
  $region2: #{gnn_layer.3} parent=0 // loop_pre_header
    _
  $region3: #{gnn_layer.3} parent=0 // loop_header
    %s8 = sphi 0, %s12
    %p9 = scmp.ge.s32.totalorder %s8, 4
    %s15 = sphi 0, %s27
    %s16 = sphi 0, %s23
    %s17 = sphi 0, %s15
    %s18 = sphi 0, %s16
    %s19 = sphi 0, %s17
    %s20 = sphi 0, %s18
    %s32 = sphi 0, %s34
    %s35 = sphi 0, %s32
    %s36 = sphi 0, %s35
    %s52 = sphi 0, %s36
    %s56 = sphi 0, %s56
    %s58 = sphi 0, %s56
    %s59 = sphi 0, %s58
    %s73 = sphi 0, %s59
    %s79 = sphi 0, %s81
    %s82 = sphi 0, %s79
    %s83 = sphi 0, %s82
    %s99 = sphi 0, %s83
  $region4: #{gnn_layer.3} parent=0 // loop_header_branch
    %11 = sbr.rel (%p9) target = $region8
  $region5: #{gnn_layer.3} parent=0 // loop_body
    %s13 = ssub.s32 %s8, 1
    %s14 = ssub.s32 %s8, 2
    %s21 = sadd.s32 1, %s16
    %p22 = scmp.ge.s32.totalorder %s21, 1
    %s23 = scalar_select %p22, 0, %s21
    %s24 = sadd.s32 1, %s15
    %s25 = scalar_select %p22, %s24, %s15
    %p26 = scmp.ge.s32.totalorder %s25, 2
    %s27 = scalar_select %p26, 0, %s25
    %s28 = ssub.s32 %s15, %s27
    %s29 = ssub.s32 %s16, %s23
    %s30 = sor.u32 %s28, %s29
    %p31 = scmp.eq.s32.totalorder %s30, 0
    %s33 = sadd.s32 %s32, 1
    %s34 = scalar_select %p31, %s32, %s33
    %p37 = pneg %p31
    %p38 = scmp.eq.s32.totalorder %s8, 1
    %p39 = por %p37, %p38
    %p40 = scmp.ne.s32.totalorder %s32, %s35
    %p41 = scmp.eq.s32.totalorder %s8, 0
    %p42 = por %p40, %p41
    %p43 = scmp.ne.s32.totalorder %s32, %s35
    %p44 = scmp.eq.s32.totalorder %s13, 1
    %p45 = por %p43, %p44
    %p46 = scmp.ne.s32.totalorder %s35, %s36
    %p47 = scmp.eq.s32.totalorder %s13, 0
    %p48 = por %p46, %p47
    %p49 = scmp.ne.s32.totalorder %s35, %s36
    %p50 = scmp.eq.s32.totalorder %s14, 1
    %p51 = por %p49, %p50
    %p53 = scmp.ne.s32.totalorder %s36, %s52
    %p54 = scmp.eq.s32.totalorder %s14, 0
    %p55 = por %p53, %p54
    %s57 = sadd.s32 %s56, 1
    %p60 = scmp.eq.s32.totalorder %s8, 1
    %p61 = scmp.ne.s32.totalorder %s56, %s58
    %p62 = scmp.eq.s32.totalorder %s8, 0
    %p63 = por %p61, %p62
    %p64 = scmp.ne.s32.totalorder %s56, %s58
    %p65 = scmp.eq.s32.totalorder %s13, 1
    %p66 = por %p64, %p65
    %p67 = scmp.ne.s32.totalorder %s58, %s59
    %p68 = scmp.eq.s32.totalorder %s13, 0
    %p69 = por %p67, %p68
    %p70 = scmp.ne.s32.totalorder %s58, %s59
    %p71 = scmp.eq.s32.totalorder %s14, 1
    %p72 = por %p70, %p71
    %p74 = scmp.ne.s32.totalorder %s59, %s73
    %p75 = scmp.eq.s32.totalorder %s14, 0
    %p76 = por %p74, %p75
    %s77 = ssub.s32 %s15, %s27
    %p78 = scmp.eq.s32.totalorder %s77, 0
    %s80 = sadd.s32 %s79, 1
    %s81 = scalar_select %p78, %s79, %s80
    %p84 = pneg %p78
    %p85 = scmp.eq.s32.totalorder %s8, 1
    %p86 = por %p84, %p85
    %p87 = scmp.ne.s32.totalorder %s79, %s82
    %p88 = scmp.eq.s32.totalorder %s8, 0
    %p89 = por %p87, %p88
    %p90 = scmp.ne.s32.totalorder %s79, %s82
    %p91 = scmp.eq.s32.totalorder %s13, 1
    %p92 = por %p90, %p91
    %p93 = scmp.ne.s32.totalorder %s82, %s83
    %p94 = scmp.eq.s32.totalorder %s13, 0
    %p95 = por %p93, %p94
    %p96 = scmp.ne.s32.totalorder %s82, %s83
    %p97 = scmp.eq.s32.totalorder %s14, 1
    %p98 = por %p96, %p97
    %p100 = scmp.ne.s32.totalorder %s83, %s99
    %p101 = scmp.eq.s32.totalorder %s14, 0
    %p102 = por %p100, %p101
    %p103 = scmp.le.s32.totalorder 1, %s8
    %p104 = scmp.lt.s32.totalorder %s8, 3
    %p105 = pnand %p103, %p104
    %p106 = pneg %p105
    // Predicated region
    $region9: #{gnn_layer.3} parent=5 // pred_check
      _
    $region10: #{gnn_layer.3} parent=5 // pred_check_branch
      %108 = sbr.rel (%p105) target = $region12
    $region11: #{gnn_layer.3} parent=5 // pred_region
      %s109 = ssub.s32 %s8, 1
      // Predicated region
      $region13: #{gnn_layer.3} parent=11 // pred_check
        %p110 = pneg %p69
      $region14: #{gnn_layer.3} parent=11 // pred_check_branch
        %112 = sbr.rel (%p110) target = $region16
      $region15: #{gnn_layer.3} parent=11 // pred_region
        _
      $region16: #{gnn_layer.3} parent=11 // pred_fallthru
        _
    $region12: #{gnn_layer.3} parent=5 // pred_fallthru
      _
    %p113 = scmp.lt.s32.totalorder %s8, 2
    // Predicated region
    $region17: #{gnn_layer.3} parent=5 // pred_check
      %p114 = pneg %p113
    $region18: #{gnn_layer.3} parent=5 // pred_check_branch
      %116 = sbr.rel (%p114) target = $region20
    $region19: #{gnn_layer.3} parent=5 // pred_region
      // Predicated region
      $region21: #{gnn_layer.3} parent=19 // pred_check
        %p117 = pneg %p42
      $region22: #{gnn_layer.3} parent=19 // pred_check_branch
        %119 = sbr.rel (%p117) target = $region24
      $region23: #{gnn_layer.3} parent=19 // pred_region
        %s120 = smul.u32 8, %s15
        %s121 = smul.u32 4, %s16
        %p122 = scmp.lt.s32.totalorder %s120, 15
        %s123 = scalar_select %p122, %s120, 15
        %p124 = scmp.lt.s32.totalorder %s121, 3
        %s125 = scalar_select %p124, %s121, 3
        %s126 = smul.addr %s123, 4
        %s127 = sadd.s32 %s125, %s126
        %s128 = smul.addr %s127, 8
        %s129 = scalar_lea.vmem %s0, %s128
        %s130 = smul.u32 8, %s15
        %s131 = smul.u32 4, %s16
      $region24: #{gnn_layer.3} parent=19 // pred_fallthru
        _
    $region20: #{gnn_layer.3} parent=5 // pred_fallthru
      _
    %p132 = scmp.le.s32.totalorder 1, %s8
    %p133 = scmp.lt.s32.totalorder %s8, 3
    %p134 = pnand %p132, %p133
    %p135 = pneg %p134
    // Predicated region
    $region25: #{gnn_layer.3} parent=5 // pred_check
      _
    $region26: #{gnn_layer.3} parent=5 // pred_check_branch
      %137 = sbr.rel (%p134) target = $region28
    $region27: #{gnn_layer.3} parent=5 // pred_region
      %s138 = ssub.s32 %s8, 1
      %s139 = smul.u32 8, %s17
      %s140 = smul.u32 4, %s18
      %p141 = scmp.lt.s32.totalorder %s139, 15
      %s142 = scalar_select %p141, %s139, 15
      %p143 = scmp.lt.s32.totalorder %s140, 3
      %s144 = scalar_select %p143, %s140, 3
      %s145 = smul.addr %s142, 4
      %s146 = sadd.s32 %s144, %s145
      %s147 = smul.addr %s146, 8
      %s148 = scalar_lea.vmem %s0, %s147
      %p149 = pneg %p48
      %p150 = pneg %p45
      %p151 = pneg %p69
      %p152 = pneg %p66
      %p153 = pneg %p95
      %p154 = pneg %p92
      %s155 = smul.u32 32, %s17
      %p156 = scmp.lt.s32.totalorder %s155, 63
      %s157 = scalar_select %p156, %s155, 63
      %s158 = smul.addr %s157, 8
      %s159 = scalar_lea.vmem %s2, %s158
      %s160 = smul.u32 8, %s17
      %s161 = smul.u32 4, %s18
      %p162 = scmp.lt.s32.totalorder %s160, 15
      %s163 = scalar_select %p162, %s160, 15
      %p164 = scmp.lt.s32.totalorder %s161, 3
      %s165 = scalar_select %p164, %s161, 3
      %s166 = smul.addr %s163, 4
      %s167 = sadd.s32 %s165, %s166
      %s168 = smul.addr %s167, 8
      %s169 = scalar_lea.vmem %s0, %s168
      %s170 = smul.u32 8, %s17
      %s171 = smul.u32 4, %s18
      %s172 = smul.u32 32, %s17
      %p173 = scmp.lt.s32.totalorder %s172, 63
      %s174 = scalar_select %p173, %s172, 63
      %s175 = smul.addr %s174, 8
      %s176 = scalar_lea.vmem %s2, %s175
      %s177 = smul.u32 32, %s17
      %p178 = scmp.eq.s32.totalorder %s18, 0
      // Predicated region
      $region29: #{gnn_layer.3} parent=27 // pred_check
        %p179 = pneg %p178
      $region30: #{gnn_layer.3} parent=27 // pred_check_branch
        %181 = sbr.rel (%p179) target = $region32
      $region31: #{gnn_layer.3} parent=27 // pred_region
        %182 = vst [vmem:[#allocation2] sm:$0xff] 0.0
        %183 = vst [vmem:[#allocation2 + $0x8] sm:$0xff] 0.0
        %184 = vst [vmem:[#allocation2 + $0x10] sm:$0xff] 0.0
        %185 = vst [vmem:[#allocation2 + $0x18] sm:$0xff] 0.0
        %186 = vst [vmem:[#allocation2 + $0x20] sm:$0xff] 0.0
        %187 = vst [vmem:[#allocation2 + $0x28] sm:$0xff] 0.0
        %188 = vst [vmem:[#allocation2 + $0x30] sm:$0xff] 0.0
        %189 = vst [vmem:[#allocation2 + $0x38] sm:$0xff] 0.0
        %190 = vst [vmem:[#allocation2 + $0x40] sm:$0xff] 0.0
        %191 = vst [vmem:[#allocation2 + $0x48] sm:$0xff] 0.0
        %192 = vst [vmem:[#allocation2 + $0x50] sm:$0xff] 0.0
        %193 = vst [vmem:[#allocation2 + $0x58] sm:$0xff] 0.0
        %194 = vst [vmem:[#allocation2 + $0x60] sm:$0xff] 0.0
        %195 = vst [vmem:[#allocation2 + $0x68] sm:$0xff] 0.0
        %196 = vst [vmem:[#allocation2 + $0x70] sm:$0xff] 0.0
        %197 = vst [vmem:[#allocation2 + $0x78] sm:$0xff] 0.0
        %198 = vst [vmem:[#allocation2 + $0x80] sm:$0xff] 0.0
        %199 = vst [vmem:[#allocation2 + $0x88] sm:$0xff] 0.0
        %200 = vst [vmem:[#allocation2 + $0x90] sm:$0xff] 0.0
        %201 = vst [vmem:[#allocation2 + $0x98] sm:$0xff] 0.0
        %202 = vst [vmem:[#allocation2 + $0xa0] sm:$0xff] 0.0
        %203 = vst [vmem:[#allocation2 + $0xa8] sm:$0xff] 0.0
        %204 = vst [vmem:[#allocation2 + $0xb0] sm:$0xff] 0.0
        %205 = vst [vmem:[#allocation2 + $0xb8] sm:$0xff] 0.0
        %206 = vst [vmem:[#allocation2 + $0xc0] sm:$0xff] 0.0
        %207 = vst [vmem:[#allocation2 + $0xc8] sm:$0xff] 0.0
        %208 = vst [vmem:[#allocation2 + $0xd0] sm:$0xff] 0.0
        %209 = vst [vmem:[#allocation2 + $0xd8] sm:$0xff] 0.0
        %210 = vst [vmem:[#allocation2 + $0xe0] sm:$0xff] 0.0
        %211 = vst [vmem:[#allocation2 + $0xe8] sm:$0xff] 0.0
        %212 = vst [vmem:[#allocation2 + $0xf0] sm:$0xff] 0.0
        %213 = vst [vmem:[#allocation2 + $0xf8] sm:$0xff] 0.0
      $region32: #{gnn_layer.3} parent=27 // pred_fallthru
        _
      %v214 = vld [vmem:[%s169] sm:$0xff]
      %v215 = vld [vmem:[%s169 + $0x8] sm:$0xff]
      %v216 = vld [vmem:[%s169 + $0x10] sm:$0xff]
      %v217 = vld [vmem:[%s169 + $0x18] sm:$0xff]
      %v218 = vld [vmem:[%s169 + $0x20] sm:$0xff]
      %v219 = vld [vmem:[%s169 + $0x28] sm:$0xff]
      %v220 = vld [vmem:[%s169 + $0x30] sm:$0xff]
      %v221 = vld [vmem:[%s169 + $0x38] sm:$0xff]
      %v222 = vld [vmem:[%s169 + $0x40] sm:$0xff]
      %v223 = vld [vmem:[%s169 + $0x48] sm:$0xff]
      %v224 = vld [vmem:[%s169 + $0x50] sm:$0xff]
      %v225 = vld [vmem:[%s169 + $0x58] sm:$0xff]
      %v226 = vld [vmem:[%s169 + $0x60] sm:$0xff]
      %v227 = vld [vmem:[%s169 + $0x68] sm:$0xff]
      %v228 = vld [vmem:[%s169 + $0x70] sm:$0xff]
      %v229 = vld [vmem:[%s169 + $0x78] sm:$0xff]
      %v230 = vld [vmem:[%s169 + $0x80] sm:$0xff]
      %v231 = vld [vmem:[%s169 + $0x88] sm:$0xff]
      %v232 = vld [vmem:[%s169 + $0x90] sm:$0xff]
      %v233 = vld [vmem:[%s169 + $0x98] sm:$0xff]
      %v234 = vld [vmem:[%s169 + $0xa0] sm:$0xff]
      %v235 = vld [vmem:[%s169 + $0xa8] sm:$0xff]
      %v236 = vld [vmem:[%s169 + $0xb0] sm:$0xff]
      %v237 = vld [vmem:[%s169 + $0xb8] sm:$0xff]
      %v238 = vld [vmem:[%s169 + $0xc0] sm:$0xff]
      %v239 = vld [vmem:[%s169 + $0xc8] sm:$0xff]
      %v240 = vld [vmem:[%s169 + $0xd0] sm:$0xff]
      %v241 = vld [vmem:[%s169 + $0xd8] sm:$0xff]
      %v242 = vld [vmem:[%s169 + $0xe0] sm:$0xff]
      %v243 = vld [vmem:[%s169 + $0xe8] sm:$0xff]
      %v244 = vld [vmem:[%s169 + $0xf0] sm:$0xff]
      %v245 = vld [vmem:[%s169 + $0xf8] sm:$0xff]
      %v246 = vunpack.c.0.s8 %v214
      %v247 = vunpack.c.0.s8 %v215
      %v248 = vunpack.c.0.s8 %v216
      %v249 = vunpack.c.0.s8 %v217
      %v250 = vunpack.c.1.s8 %v214
      %v251 = vunpack.c.1.s8 %v215
      %v252 = vunpack.c.1.s8 %v216
      %v253 = vunpack.c.1.s8 %v217
      %v254 = vunpack.c.2.s8 %v214
      %v255 = vunpack.c.2.s8 %v215
      %v256 = vunpack.c.2.s8 %v216
      %v257 = vunpack.c.2.s8 %v217
      %v258 = vunpack.c.3.s8 %v214
      %v259 = vunpack.c.3.s8 %v215
      %v260 = vunpack.c.3.s8 %v216
      %v261 = vunpack.c.3.s8 %v217
      %v262 = vunpack.c.0.s8 %v218
      %v263 = vunpack.c.0.s8 %v219
      %v264 = vunpack.c.0.s8 %v220
      %v265 = vunpack.c.0.s8 %v221
      %v266 = vunpack.c.1.s8 %v218
      %v267 = vunpack.c.1.s8 %v219
      %v268 = vunpack.c.1.s8 %v220
      %v269 = vunpack.c.1.s8 %v221
      %v270 = vunpack.c.2.s8 %v218
      %v271 = vunpack.c.2.s8 %v219
      %v272 = vunpack.c.2.s8 %v220
      %v273 = vunpack.c.2.s8 %v221
      %v274 = vunpack.c.3.s8 %v218
      %v275 = vunpack.c.3.s8 %v219
      %v276 = vunpack.c.3.s8 %v220
      %v277 = vunpack.c.3.s8 %v221
      %v278 = vunpack.c.0.s8 %v222
      %v279 = vunpack.c.0.s8 %v223
      %v280 = vunpack.c.0.s8 %v224
      %v281 = vunpack.c.0.s8 %v225
      %v282 = vunpack.c.1.s8 %v222
      %v283 = vunpack.c.1.s8 %v223
      %v284 = vunpack.c.1.s8 %v224
      %v285 = vunpack.c.1.s8 %v225
      %v286 = vunpack.c.2.s8 %v222
      %v287 = vunpack.c.2.s8 %v223
      %v288 = vunpack.c.2.s8 %v224
      %v289 = vunpack.c.2.s8 %v225
      %v290 = vunpack.c.3.s8 %v222
      %v291 = vunpack.c.3.s8 %v223
      %v292 = vunpack.c.3.s8 %v224
      %v293 = vunpack.c.3.s8 %v225
      %v294 = vunpack.c.0.s8 %v226
      %v295 = vunpack.c.0.s8 %v227
      %v296 = vunpack.c.0.s8 %v228
      %v297 = vunpack.c.0.s8 %v229
      %v298 = vunpack.c.1.s8 %v226
      %v299 = vunpack.c.1.s8 %v227
      %v300 = vunpack.c.1.s8 %v228
      %v301 = vunpack.c.1.s8 %v229
      %v302 = vunpack.c.2.s8 %v226
      %v303 = vunpack.c.2.s8 %v227
      %v304 = vunpack.c.2.s8 %v228
      %v305 = vunpack.c.2.s8 %v229
      %v306 = vunpack.c.3.s8 %v226
      %v307 = vunpack.c.3.s8 %v227
      %v308 = vunpack.c.3.s8 %v228
      %v309 = vunpack.c.3.s8 %v229
      %v310 = vunpack.c.0.s8 %v230
      %v311 = vunpack.c.0.s8 %v231
      %v312 = vunpack.c.0.s8 %v232
      %v313 = vunpack.c.0.s8 %v233
      %v314 = vunpack.c.1.s8 %v230
      %v315 = vunpack.c.1.s8 %v231
      %v316 = vunpack.c.1.s8 %v232
      %v317 = vunpack.c.1.s8 %v233
      %v318 = vunpack.c.2.s8 %v230
      %v319 = vunpack.c.2.s8 %v231
      %v320 = vunpack.c.2.s8 %v232
      %v321 = vunpack.c.2.s8 %v233
      %v322 = vunpack.c.3.s8 %v230
      %v323 = vunpack.c.3.s8 %v231
      %v324 = vunpack.c.3.s8 %v232
      %v325 = vunpack.c.3.s8 %v233
      %v326 = vunpack.c.0.s8 %v234
      %v327 = vunpack.c.0.s8 %v235
      %v328 = vunpack.c.0.s8 %v236
      %v329 = vunpack.c.0.s8 %v237
      %v330 = vunpack.c.1.s8 %v234
      %v331 = vunpack.c.1.s8 %v235
      %v332 = vunpack.c.1.s8 %v236
      %v333 = vunpack.c.1.s8 %v237
      %v334 = vunpack.c.2.s8 %v234
      %v335 = vunpack.c.2.s8 %v235
      %v336 = vunpack.c.2.s8 %v236
      %v337 = vunpack.c.2.s8 %v237
      %v338 = vunpack.c.3.s8 %v234
      %v339 = vunpack.c.3.s8 %v235
      %v340 = vunpack.c.3.s8 %v236
      %v341 = vunpack.c.3.s8 %v237
      %v342 = vunpack.c.0.s8 %v238
      %v343 = vunpack.c.0.s8 %v239
      %v344 = vunpack.c.0.s8 %v240
      %v345 = vunpack.c.0.s8 %v241
      %v346 = vunpack.c.1.s8 %v238
      %v347 = vunpack.c.1.s8 %v239
      %v348 = vunpack.c.1.s8 %v240
      %v349 = vunpack.c.1.s8 %v241
      %v350 = vunpack.c.2.s8 %v238
      %v351 = vunpack.c.2.s8 %v239
      %v352 = vunpack.c.2.s8 %v240
      %v353 = vunpack.c.2.s8 %v241
      %v354 = vunpack.c.3.s8 %v238
      %v355 = vunpack.c.3.s8 %v239
      %v356 = vunpack.c.3.s8 %v240
      %v357 = vunpack.c.3.s8 %v241
      %v358 = vunpack.c.0.s8 %v242
      %v359 = vunpack.c.0.s8 %v243
      %v360 = vunpack.c.0.s8 %v244
      %v361 = vunpack.c.0.s8 %v245
      %v362 = vunpack.c.1.s8 %v242
      %v363 = vunpack.c.1.s8 %v243
      %v364 = vunpack.c.1.s8 %v244
      %v365 = vunpack.c.1.s8 %v245
      %v366 = vunpack.c.2.s8 %v242
      %v367 = vunpack.c.2.s8 %v243
      %v368 = vunpack.c.2.s8 %v244
      %v369 = vunpack.c.2.s8 %v245
      %v370 = vunpack.c.3.s8 %v242
      %v371 = vunpack.c.3.s8 %v243
      %v372 = vunpack.c.3.s8 %v244
      %v373 = vunpack.c.3.s8 %v245
      %v374 = vcvt.s32.f32 %v246
      %v375 = vcvt.s32.f32 %v247
      %v376 = vcvt.s32.f32 %v248
      %v377 = vcvt.s32.f32 %v249
      %v378 = vcvt.s32.f32 %v250
      %v379 = vcvt.s32.f32 %v251
      %v380 = vcvt.s32.f32 %v252
      %v381 = vcvt.s32.f32 %v253
      %v382 = vcvt.s32.f32 %v254
      %v383 = vcvt.s32.f32 %v255
      %v384 = vcvt.s32.f32 %v256
      %v385 = vcvt.s32.f32 %v257
      %v386 = vcvt.s32.f32 %v258
      %v387 = vcvt.s32.f32 %v259
      %v388 = vcvt.s32.f32 %v260
      %v389 = vcvt.s32.f32 %v261
      %v390 = vcvt.s32.f32 %v262
      %v391 = vcvt.s32.f32 %v263
      %v392 = vcvt.s32.f32 %v264
      %v393 = vcvt.s32.f32 %v265
      %v394 = vcvt.s32.f32 %v266
      %v395 = vcvt.s32.f32 %v267
      %v396 = vcvt.s32.f32 %v268
      %v397 = vcvt.s32.f32 %v269
      %v398 = vcvt.s32.f32 %v270
      %v399 = vcvt.s32.f32 %v271
      %v400 = vcvt.s32.f32 %v272
      %v401 = vcvt.s32.f32 %v273
      %v402 = vcvt.s32.f32 %v274
      %v403 = vcvt.s32.f32 %v275
      %v404 = vcvt.s32.f32 %v276
      %v405 = vcvt.s32.f32 %v277
      %v406 = vcvt.s32.f32 %v278
      %v407 = vcvt.s32.f32 %v279
      %v408 = vcvt.s32.f32 %v280
      %v409 = vcvt.s32.f32 %v281
      %v410 = vcvt.s32.f32 %v282
      %v411 = vcvt.s32.f32 %v283
      %v412 = vcvt.s32.f32 %v284
      %v413 = vcvt.s32.f32 %v285
      %v414 = vcvt.s32.f32 %v286
      %v415 = vcvt.s32.f32 %v287
      %v416 = vcvt.s32.f32 %v288
      %v417 = vcvt.s32.f32 %v289
      %v418 = vcvt.s32.f32 %v290
      %v419 = vcvt.s32.f32 %v291
      %v420 = vcvt.s32.f32 %v292
      %v421 = vcvt.s32.f32 %v293
      %v422 = vcvt.s32.f32 %v294
      %v423 = vcvt.s32.f32 %v295
      %v424 = vcvt.s32.f32 %v296
      %v425 = vcvt.s32.f32 %v297
      %v426 = vcvt.s32.f32 %v298
      %v427 = vcvt.s32.f32 %v299
      %v428 = vcvt.s32.f32 %v300
      %v429 = vcvt.s32.f32 %v301
      %v430 = vcvt.s32.f32 %v302
      %v431 = vcvt.s32.f32 %v303
      %v432 = vcvt.s32.f32 %v304
      %v433 = vcvt.s32.f32 %v305
      %v434 = vcvt.s32.f32 %v306
      %v435 = vcvt.s32.f32 %v307
      %v436 = vcvt.s32.f32 %v308
      %v437 = vcvt.s32.f32 %v309
      %v438 = vcvt.s32.f32 %v310
      %v439 = vcvt.s32.f32 %v311
      %v440 = vcvt.s32.f32 %v312
      %v441 = vcvt.s32.f32 %v313
      %v442 = vcvt.s32.f32 %v314
      %v443 = vcvt.s32.f32 %v315
      %v444 = vcvt.s32.f32 %v316
      %v445 = vcvt.s32.f32 %v317
      %v446 = vcvt.s32.f32 %v318
      %v447 = vcvt.s32.f32 %v319
      %v448 = vcvt.s32.f32 %v320
      %v449 = vcvt.s32.f32 %v321
      %v450 = vcvt.s32.f32 %v322
      %v451 = vcvt.s32.f32 %v323
      %v452 = vcvt.s32.f32 %v324
      %v453 = vcvt.s32.f32 %v325
      %v454 = vcvt.s32.f32 %v326
      %v455 = vcvt.s32.f32 %v327
      %v456 = vcvt.s32.f32 %v328
      %v457 = vcvt.s32.f32 %v329
      %v458 = vcvt.s32.f32 %v330
      %v459 = vcvt.s32.f32 %v331
      %v460 = vcvt.s32.f32 %v332
      %v461 = vcvt.s32.f32 %v333
      %v462 = vcvt.s32.f32 %v334
      %v463 = vcvt.s32.f32 %v335
      %v464 = vcvt.s32.f32 %v336
      %v465 = vcvt.s32.f32 %v337
      %v466 = vcvt.s32.f32 %v338
      %v467 = vcvt.s32.f32 %v339
      %v468 = vcvt.s32.f32 %v340
      %v469 = vcvt.s32.f32 %v341
      %v470 = vcvt.s32.f32 %v342
      %v471 = vcvt.s32.f32 %v343
      %v472 = vcvt.s32.f32 %v344
      %v473 = vcvt.s32.f32 %v345
      %v474 = vcvt.s32.f32 %v346
      %v475 = vcvt.s32.f32 %v347
      %v476 = vcvt.s32.f32 %v348
      %v477 = vcvt.s32.f32 %v349
      %v478 = vcvt.s32.f32 %v350
      %v479 = vcvt.s32.f32 %v351
      %v480 = vcvt.s32.f32 %v352
      %v481 = vcvt.s32.f32 %v353
      %v482 = vcvt.s32.f32 %v354
      %v483 = vcvt.s32.f32 %v355
      %v484 = vcvt.s32.f32 %v356
      %v485 = vcvt.s32.f32 %v357
      %v486 = vcvt.s32.f32 %v358
      %v487 = vcvt.s32.f32 %v359
      %v488 = vcvt.s32.f32 %v360
      %v489 = vcvt.s32.f32 %v361
      %v490 = vcvt.s32.f32 %v362
      %v491 = vcvt.s32.f32 %v363
      %v492 = vcvt.s32.f32 %v364
      %v493 = vcvt.s32.f32 %v365
      %v494 = vcvt.s32.f32 %v366
      %v495 = vcvt.s32.f32 %v367
      %v496 = vcvt.s32.f32 %v368
      %v497 = vcvt.s32.f32 %v369
      %v498 = vcvt.s32.f32 %v370
      %v499 = vcvt.s32.f32 %v371
      %v500 = vcvt.s32.f32 %v372
      %v501 = vcvt.s32.f32 %v373
      %v502 = vpack.c.bf16 %v378, %v374
      %v503 = vpack.c.bf16 %v379, %v375
      %v504 = vpack.c.bf16 %v380, %v376
      %v505 = vpack.c.bf16 %v381, %v377
      %v506 = vpack.c.bf16 %v386, %v382
      %v507 = vpack.c.bf16 %v387, %v383
      %v508 = vpack.c.bf16 %v388, %v384
      %v509 = vpack.c.bf16 %v389, %v385
      %v510 = vpack.c.bf16 %v394, %v390
      %v511 = vpack.c.bf16 %v395, %v391
      %v512 = vpack.c.bf16 %v396, %v392
      %v513 = vpack.c.bf16 %v397, %v393
      %v514 = vpack.c.bf16 %v402, %v398
      %v515 = vpack.c.bf16 %v403, %v399
      %v516 = vpack.c.bf16 %v404, %v400
      %v517 = vpack.c.bf16 %v405, %v401
      %v518 = vpack.c.bf16 %v410, %v406
      %v519 = vpack.c.bf16 %v411, %v407
      %v520 = vpack.c.bf16 %v412, %v408
      %v521 = vpack.c.bf16 %v413, %v409
      %v522 = vpack.c.bf16 %v418, %v414
      %v523 = vpack.c.bf16 %v419, %v415
      %v524 = vpack.c.bf16 %v420, %v416
      %v525 = vpack.c.bf16 %v421, %v417
      %v526 = vpack.c.bf16 %v426, %v422
      %v527 = vpack.c.bf16 %v427, %v423
      %v528 = vpack.c.bf16 %v428, %v424
      %v529 = vpack.c.bf16 %v429, %v425
      %v530 = vpack.c.bf16 %v434, %v430
      %v531 = vpack.c.bf16 %v435, %v431
      %v532 = vpack.c.bf16 %v436, %v432
      %v533 = vpack.c.bf16 %v437, %v433
      %v534 = vpack.c.bf16 %v442, %v438
      %v535 = vpack.c.bf16 %v443, %v439
      %v536 = vpack.c.bf16 %v444, %v440
      %v537 = vpack.c.bf16 %v445, %v441
      %v538 = vpack.c.bf16 %v450, %v446
      %v539 = vpack.c.bf16 %v451, %v447
      %v540 = vpack.c.bf16 %v452, %v448
      %v541 = vpack.c.bf16 %v453, %v449
      %v542 = vpack.c.bf16 %v458, %v454
      %v543 = vpack.c.bf16 %v459, %v455
      %v544 = vpack.c.bf16 %v460, %v456
      %v545 = vpack.c.bf16 %v461, %v457
      %v546 = vpack.c.bf16 %v466, %v462
      %v547 = vpack.c.bf16 %v467, %v463
      %v548 = vpack.c.bf16 %v468, %v464
      %v549 = vpack.c.bf16 %v469, %v465
      %v550 = vpack.c.bf16 %v474, %v470
      %v551 = vpack.c.bf16 %v475, %v471
      %v552 = vpack.c.bf16 %v476, %v472
      %v553 = vpack.c.bf16 %v477, %v473
      %v554 = vpack.c.bf16 %v482, %v478
      %v555 = vpack.c.bf16 %v483, %v479
      %v556 = vpack.c.bf16 %v484, %v480
      %v557 = vpack.c.bf16 %v485, %v481
      %v558 = vpack.c.bf16 %v490, %v486
      %v559 = vpack.c.bf16 %v491, %v487
      %v560 = vpack.c.bf16 %v492, %v488
      %v561 = vpack.c.bf16 %v493, %v489
      %v562 = vpack.c.bf16 %v498, %v494
      %v563 = vpack.c.bf16 %v499, %v495
      %v564 = vpack.c.bf16 %v500, %v496
      %v565 = vpack.c.bf16 %v501, %v497
      %s566 = smul.u32 %s18, 512
      %s567 = sshra.s32 %s566, 3
      %s568 = sand.u32 %s566, 7
      %s569 = smul.addr %s567, 4
      %s570 = scalar_lea.vmem %s1, %s569
      %v571 = vld [vmem:[%s570] sm:$0xf]
      %v572 = vld [vmem:[%s570 + $0x4] sm:$0xf]
      %v573 = vld [vmem:[%s570 + $0x8] sm:$0xf]
      %v574 = vld [vmem:[%s570 + $0xc] sm:$0xf]
      %v575 = vld [vmem:[%s570 + $0x10] sm:$0xf]
      %v576 = vld [vmem:[%s570 + $0x14] sm:$0xf]
      %v577 = vld [vmem:[%s570 + $0x18] sm:$0xf]
      %v578 = vld [vmem:[%s570 + $0x1c] sm:$0xf]
      %v579 = vld [vmem:[%s570 + $0x20] sm:$0xf]
      %v580 = vld [vmem:[%s570 + $0x24] sm:$0xf]
      %v581 = vld [vmem:[%s570 + $0x28] sm:$0xf]
      %v582 = vld [vmem:[%s570 + $0x2c] sm:$0xf]
      %v583 = vld [vmem:[%s570 + $0x30] sm:$0xf]
      %v584 = vld [vmem:[%s570 + $0x34] sm:$0xf]
      %v585 = vld [vmem:[%s570 + $0x38] sm:$0xf]
      %v586 = vld [vmem:[%s570 + $0x3c] sm:$0xf]
      %v587 = vld [vmem:[%s570 + $0x40] sm:$0xf]
      %v588 = vld [vmem:[%s570 + $0x44] sm:$0xf]
      %v589 = vld [vmem:[%s570 + $0x48] sm:$0xf]
      %v590 = vld [vmem:[%s570 + $0x4c] sm:$0xf]
      %v591 = vld [vmem:[%s570 + $0x50] sm:$0xf]
      %v592 = vld [vmem:[%s570 + $0x54] sm:$0xf]
      %v593 = vld [vmem:[%s570 + $0x58] sm:$0xf]
      %v594 = vld [vmem:[%s570 + $0x5c] sm:$0xf]
      %v595 = vld [vmem:[%s570 + $0x60] sm:$0xf]
      %v596 = vld [vmem:[%s570 + $0x64] sm:$0xf]
      %v597 = vld [vmem:[%s570 + $0x68] sm:$0xf]
      %v598 = vld [vmem:[%s570 + $0x6c] sm:$0xf]
      %v599 = vld [vmem:[%s570 + $0x70] sm:$0xf]
      %v600 = vld [vmem:[%s570 + $0x74] sm:$0xf]
      %v601 = vld [vmem:[%s570 + $0x78] sm:$0xf]
      %v602 = vld [vmem:[%s570 + $0x7c] sm:$0xf]
      %v603 = vld [vmem:[%s570 + $0x80] sm:$0xf]
      %v604 = vld [vmem:[%s570 + $0x84] sm:$0xf]
      %v605 = vld [vmem:[%s570 + $0x88] sm:$0xf]
      %v606 = vld [vmem:[%s570 + $0x8c] sm:$0xf]
      %v607 = vld [vmem:[%s570 + $0x90] sm:$0xf]
      %v608 = vld [vmem:[%s570 + $0x94] sm:$0xf]
      %v609 = vld [vmem:[%s570 + $0x98] sm:$0xf]
      %v610 = vld [vmem:[%s570 + $0x9c] sm:$0xf]
      %v611 = vld [vmem:[%s570 + $0xa0] sm:$0xf]
      %v612 = vld [vmem:[%s570 + $0xa4] sm:$0xf]
      %v613 = vld [vmem:[%s570 + $0xa8] sm:$0xf]
      %v614 = vld [vmem:[%s570 + $0xac] sm:$0xf]
      %v615 = vld [vmem:[%s570 + $0xb0] sm:$0xf]
      %v616 = vld [vmem:[%s570 + $0xb4] sm:$0xf]
      %v617 = vld [vmem:[%s570 + $0xb8] sm:$0xf]
      %v618 = vld [vmem:[%s570 + $0xbc] sm:$0xf]
      %v619 = vld [vmem:[%s570 + $0xc0] sm:$0xf]
      %v620 = vld [vmem:[%s570 + $0xc4] sm:$0xf]
      %v621 = vld [vmem:[%s570 + $0xc8] sm:$0xf]
      %v622 = vld [vmem:[%s570 + $0xcc] sm:$0xf]
      %v623 = vld [vmem:[%s570 + $0xd0] sm:$0xf]
      %v624 = vld [vmem:[%s570 + $0xd4] sm:$0xf]
      %v625 = vld [vmem:[%s570 + $0xd8] sm:$0xf]
      %v626 = vld [vmem:[%s570 + $0xdc] sm:$0xf]
      %v627 = vld [vmem:[%s570 + $0xe0] sm:$0xf]
      %v628 = vld [vmem:[%s570 + $0xe4] sm:$0xf]
      %v629 = vld [vmem:[%s570 + $0xe8] sm:$0xf]
      %v630 = vld [vmem:[%s570 + $0xec] sm:$0xf]
      %v631 = vld [vmem:[%s570 + $0xf0] sm:$0xf]
      %v632 = vld [vmem:[%s570 + $0xf4] sm:$0xf]
      %v633 = vld [vmem:[%s570 + $0xf8] sm:$0xf]
      %v634 = vld [vmem:[%s570 + $0xfc] sm:$0xf]
      %v635 = vld [vmem:[#allocation2] sm:$0xff]
      %v636 = vld [vmem:[#allocation2 + $0x8] sm:$0xff]
      %v637 = vld [vmem:[#allocation2 + $0x10] sm:$0xff]
      %v638 = vld [vmem:[#allocation2 + $0x18] sm:$0xff]
      %v639 = vld [vmem:[#allocation2 + $0x20] sm:$0xff]
      %v640 = vld [vmem:[#allocation2 + $0x28] sm:$0xff]
      %v641 = vld [vmem:[#allocation2 + $0x30] sm:$0xff]
      %v642 = vld [vmem:[#allocation2 + $0x38] sm:$0xff]
      %v643 = vld [vmem:[#allocation2 + $0x40] sm:$0xff]
      %v644 = vld [vmem:[#allocation2 + $0x48] sm:$0xff]
      %v645 = vld [vmem:[#allocation2 + $0x50] sm:$0xff]
      %v646 = vld [vmem:[#allocation2 + $0x58] sm:$0xff]
      %v647 = vld [vmem:[#allocation2 + $0x60] sm:$0xff]
      %v648 = vld [vmem:[#allocation2 + $0x68] sm:$0xff]
      %v649 = vld [vmem:[#allocation2 + $0x70] sm:$0xff]
      %v650 = vld [vmem:[#allocation2 + $0x78] sm:$0xff]
      %v651 = vld [vmem:[#allocation2 + $0x80] sm:$0xff]
      %v652 = vld [vmem:[#allocation2 + $0x88] sm:$0xff]
      %v653 = vld [vmem:[#allocation2 + $0x90] sm:$0xff]
      %v654 = vld [vmem:[#allocation2 + $0x98] sm:$0xff]
      %v655 = vld [vmem:[#allocation2 + $0xa0] sm:$0xff]
      %v656 = vld [vmem:[#allocation2 + $0xa8] sm:$0xff]
      %v657 = vld [vmem:[#allocation2 + $0xb0] sm:$0xff]
      %v658 = vld [vmem:[#allocation2 + $0xb8] sm:$0xff]
      %v659 = vld [vmem:[#allocation2 + $0xc0] sm:$0xff]
      %v660 = vld [vmem:[#allocation2 + $0xc8] sm:$0xff]
      %v661 = vld [vmem:[#allocation2 + $0xd0] sm:$0xff]
      %v662 = vld [vmem:[#allocation2 + $0xd8] sm:$0xff]
      %v663 = vld [vmem:[#allocation2 + $0xe0] sm:$0xff]
      %v664 = vld [vmem:[#allocation2 + $0xe8] sm:$0xff]
      %v665 = vld [vmem:[#allocation2 + $0xf0] sm:$0xff]
      %v666 = vld [vmem:[#allocation2 + $0xf8] sm:$0xff]
      %v731 = vunpack.c.l.b16 %v571
      %v732 = vunpack.c.l.b16 %v572
      %v733 = vunpack.c.l.b16 %v573
      %v734 = vunpack.c.l.b16 %v574
      %v735 = vunpack.c.l.b16 %v575
      %v736 = vunpack.c.l.b16 %v576
      %v737 = vunpack.c.l.b16 %v577
      %v738 = vunpack.c.l.b16 %v578
      %v739 = vunpack.c.l.b16 %v579
      %v740 = vunpack.c.l.b16 %v580
      %v741 = vunpack.c.l.b16 %v581
      %v742 = vunpack.c.l.b16 %v582
      %v743 = vunpack.c.l.b16 %v583
      %v744 = vunpack.c.l.b16 %v584
      %v745 = vunpack.c.l.b16 %v585
      %v746 = vunpack.c.l.b16 %v586
      %v747 = vunpack.c.l.b16 %v587
      %v748 = vunpack.c.l.b16 %v588
      %v749 = vunpack.c.l.b16 %v589
      %v750 = vunpack.c.l.b16 %v590
      %v751 = vunpack.c.l.b16 %v591
      %v752 = vunpack.c.l.b16 %v592
      %v753 = vunpack.c.l.b16 %v593
      %v754 = vunpack.c.l.b16 %v594
      %v755 = vunpack.c.l.b16 %v595
      %v756 = vunpack.c.l.b16 %v596
      %v757 = vunpack.c.l.b16 %v597
      %v758 = vunpack.c.l.b16 %v598
      %v759 = vunpack.c.l.b16 %v599
      %v760 = vunpack.c.l.b16 %v600
      %v761 = vunpack.c.l.b16 %v601
      %v762 = vunpack.c.l.b16 %v602
      %v763 = vunpack.c.l.b16 %v603
      %v764 = vunpack.c.l.b16 %v604
      %v765 = vunpack.c.l.b16 %v605
      %v766 = vunpack.c.l.b16 %v606
      %v767 = vunpack.c.l.b16 %v607
      %v768 = vunpack.c.l.b16 %v608
      %v769 = vunpack.c.l.b16 %v609
      %v770 = vunpack.c.l.b16 %v610
      %v771 = vunpack.c.l.b16 %v611
      %v772 = vunpack.c.l.b16 %v612
      %v773 = vunpack.c.l.b16 %v613
      %v774 = vunpack.c.l.b16 %v614
      %v775 = vunpack.c.l.b16 %v615
      %v776 = vunpack.c.l.b16 %v616
      %v777 = vunpack.c.l.b16 %v617
      %v778 = vunpack.c.l.b16 %v618
      %v779 = vunpack.c.l.b16 %v619
      %v780 = vunpack.c.l.b16 %v620
      %v781 = vunpack.c.l.b16 %v621
      %v782 = vunpack.c.l.b16 %v622
      %v783 = vunpack.c.l.b16 %v623
      %v784 = vunpack.c.l.b16 %v624
      %v785 = vunpack.c.l.b16 %v625
      %v786 = vunpack.c.l.b16 %v626
      %v787 = vunpack.c.l.b16 %v627
      %v788 = vunpack.c.l.b16 %v628
      %v789 = vunpack.c.l.b16 %v629
      %v790 = vunpack.c.l.b16 %v630
      %v791 = vunpack.c.l.b16 %v631
      %v792 = vunpack.c.l.b16 %v632
      %v793 = vunpack.c.l.b16 %v633
      %v794 = vunpack.c.l.b16 %v634
      %v795 = vpack.c.b16 %v732, %v731
      %v796 = vpack.c.b16 %v734, %v733
      %v797 = vpack.c.b16 %v736, %v735
      %v798 = vpack.c.b16 %v738, %v737
      %v799 = vpack.c.b16 %v740, %v739
      %v800 = vpack.c.b16 %v742, %v741
      %v801 = vpack.c.b16 %v744, %v743
      %v802 = vpack.c.b16 %v746, %v745
      %v803 = vpack.c.b16 %v748, %v747
      %v804 = vpack.c.b16 %v750, %v749
      %v805 = vpack.c.b16 %v752, %v751
      %v806 = vpack.c.b16 %v754, %v753
      %v807 = vpack.c.b16 %v756, %v755
      %v808 = vpack.c.b16 %v758, %v757
      %v809 = vpack.c.b16 %v760, %v759
      %v810 = vpack.c.b16 %v762, %v761
      %v811 = vpack.c.b16 %v764, %v763
      %v812 = vpack.c.b16 %v766, %v765
      %v813 = vpack.c.b16 %v768, %v767
      %v814 = vpack.c.b16 %v770, %v769
      %v815 = vpack.c.b16 %v772, %v771
      %v816 = vpack.c.b16 %v774, %v773
      %v817 = vpack.c.b16 %v776, %v775
      %v818 = vpack.c.b16 %v778, %v777
      %v819 = vpack.c.b16 %v780, %v779
      %v820 = vpack.c.b16 %v782, %v781
      %v821 = vpack.c.b16 %v784, %v783
      %v822 = vpack.c.b16 %v786, %v785
      %v823 = vpack.c.b16 %v788, %v787
      %v824 = vpack.c.b16 %v790, %v789
      %v825 = vpack.c.b16 %v792, %v791
      %v826 = vpack.c.b16 %v794, %v793
      %859 = vmatpush.bf16.msra.mxu0 %v802
      %860 = vmatpush.bf16.msra.mxu0 %v801
      %861 = vmatpush.bf16.msra.mxu0 %v800
      %862 = vmatpush.bf16.msra.mxu0 %v799
      %863 = vmatpush.bf16.msra.mxu0 %v798
      %864 = vmatpush.bf16.msra.mxu0 %v797
      %865 = vmatpush.bf16.msra.mxu0 %v796
      %866 = vmatpush.bf16.msra.mxu0 %v795
      %867 = vmatmul.bf16.gmra.mxu0 %v502
      %v868 = vpop.f32.mrf.mxu0
      %v869 = vadd.f32 0.0, %v868
      %v870 = vpop.f32.mrf.mxu0
      %v871 = vadd.f32 0.0, %v870
      %872 = vmatmul.bf16.gmra.mxu0 %v506
      %v873 = vpop.f32.mrf.mxu0
      %v874 = vadd.f32 0.0, %v873
      %v875 = vpop.f32.mrf.mxu0
      %v876 = vadd.f32 0.0, %v875
      %877 = vmatmul.bf16.gmra.mxu0 %v510
      %v878 = vpop.f32.mrf.mxu0
      %v879 = vadd.f32 0.0, %v878
      %v880 = vpop.f32.mrf.mxu0
      %v881 = vadd.f32 0.0, %v880
      %882 = vmatmul.bf16.gmra.mxu0 %v514
      %v883 = vpop.f32.mrf.mxu0
      %v884 = vadd.f32 0.0, %v883
      %v885 = vpop.f32.mrf.mxu0
      %v886 = vadd.f32 0.0, %v885
      %887 = vmatmul.bf16.gmra.mxu0 %v518
      %v888 = vpop.f32.mrf.mxu0
      %v889 = vadd.f32 0.0, %v888
      %v890 = vpop.f32.mrf.mxu0
      %v891 = vadd.f32 0.0, %v890
      %892 = vmatmul.bf16.gmra.mxu0 %v522
      %v893 = vpop.f32.mrf.mxu0
      %v894 = vadd.f32 0.0, %v893
      %v895 = vpop.f32.mrf.mxu0
      %v896 = vadd.f32 0.0, %v895
      %897 = vmatmul.bf16.gmra.mxu0 %v526
      %v898 = vpop.f32.mrf.mxu0
      %v899 = vadd.f32 0.0, %v898
      %v900 = vpop.f32.mrf.mxu0
      %v901 = vadd.f32 0.0, %v900
      %902 = vmatmul.bf16.gmra.mxu0 %v530
      %v903 = vpop.f32.mrf.mxu0
      %v904 = vadd.f32 0.0, %v903
      %v905 = vpop.f32.mrf.mxu0
      %v906 = vadd.f32 0.0, %v905
      %907 = vmatmul.bf16.gmra.mxu0 %v534
      %v908 = vpop.f32.mrf.mxu0
      %v909 = vadd.f32 0.0, %v908
      %v910 = vpop.f32.mrf.mxu0
      %v911 = vadd.f32 0.0, %v910
      %912 = vmatmul.bf16.gmra.mxu0 %v538
      %v913 = vpop.f32.mrf.mxu0
      %v914 = vadd.f32 0.0, %v913
      %v915 = vpop.f32.mrf.mxu0
      %v916 = vadd.f32 0.0, %v915
      %917 = vmatmul.bf16.gmra.mxu0 %v542
      %v918 = vpop.f32.mrf.mxu0
      %v919 = vadd.f32 0.0, %v918
      %v920 = vpop.f32.mrf.mxu0
      %v921 = vadd.f32 0.0, %v920
      %922 = vmatmul.bf16.gmra.mxu0 %v546
      %v923 = vpop.f32.mrf.mxu0
      %v924 = vadd.f32 0.0, %v923
      %v925 = vpop.f32.mrf.mxu0
      %v926 = vadd.f32 0.0, %v925
      %927 = vmatmul.bf16.gmra.mxu0 %v550
      %v928 = vpop.f32.mrf.mxu0
      %v929 = vadd.f32 0.0, %v928
      %v930 = vpop.f32.mrf.mxu0
      %v931 = vadd.f32 0.0, %v930
      %932 = vmatmul.bf16.gmra.mxu0 %v554
      %v933 = vpop.f32.mrf.mxu0
      %v934 = vadd.f32 0.0, %v933
      %v935 = vpop.f32.mrf.mxu0
      %v936 = vadd.f32 0.0, %v935
      %937 = vmatmul.bf16.gmra.mxu0 %v558
      %v938 = vpop.f32.mrf.mxu0
      %v939 = vadd.f32 0.0, %v938
      %v940 = vpop.f32.mrf.mxu0
      %v941 = vadd.f32 0.0, %v940
      %942 = vmatmul.bf16.gmra.mxu0 %v562
      %v943 = vpop.f32.mrf.mxu0
      %v944 = vadd.f32 0.0, %v943
      %v945 = vpop.f32.mrf.mxu0
      %v946 = vadd.f32 0.0, %v945
      %947 = vdwg.mxu0
      %948 = vmatpush.bf16.msra.mxu0 %v810
      %949 = vmatpush.bf16.msra.mxu0 %v809
      %950 = vmatpush.bf16.msra.mxu0 %v808
      %951 = vmatpush.bf16.msra.mxu0 %v807
      %952 = vmatpush.bf16.msra.mxu0 %v806
      %953 = vmatpush.bf16.msra.mxu0 %v805
      %954 = vmatpush.bf16.msra.mxu0 %v804
      %955 = vmatpush.bf16.msra.mxu0 %v803
      %956 = vmatmul.bf16.gmra.mxu0 %v503
      %v957 = vpop.f32.mrf.mxu0
      %v958 = vadd.f32 %v869, %v957
      %v959 = vpop.f32.mrf.mxu0
      %v960 = vadd.f32 %v871, %v959
      %961 = vmatmul.bf16.gmra.mxu0 %v507
      %v962 = vpop.f32.mrf.mxu0
      %v963 = vadd.f32 %v874, %v962
      %v964 = vpop.f32.mrf.mxu0
      %v965 = vadd.f32 %v876, %v964
      %966 = vmatmul.bf16.gmra.mxu0 %v511
      %v967 = vpop.f32.mrf.mxu0
      %v968 = vadd.f32 %v879, %v967
      %v969 = vpop.f32.mrf.mxu0
      %v970 = vadd.f32 %v881, %v969
      %971 = vmatmul.bf16.gmra.mxu0 %v515
      %v972 = vpop.f32.mrf.mxu0
      %v973 = vadd.f32 %v884, %v972
      %v974 = vpop.f32.mrf.mxu0
      %v975 = vadd.f32 %v886, %v974
      %976 = vmatmul.bf16.gmra.mxu0 %v519
      %v977 = vpop.f32.mrf.mxu0
      %v978 = vadd.f32 %v889, %v977
      %v979 = vpop.f32.mrf.mxu0
      %v980 = vadd.f32 %v891, %v979
      %981 = vmatmul.bf16.gmra.mxu0 %v523
      %v982 = vpop.f32.mrf.mxu0
      %v983 = vadd.f32 %v894, %v982
      %v984 = vpop.f32.mrf.mxu0
      %v985 = vadd.f32 %v896, %v984
      %986 = vmatmul.bf16.gmra.mxu0 %v527
      %v987 = vpop.f32.mrf.mxu0
      %v988 = vadd.f32 %v899, %v987
      %v989 = vpop.f32.mrf.mxu0
      %v990 = vadd.f32 %v901, %v989
      %991 = vmatmul.bf16.gmra.mxu0 %v531
      %v992 = vpop.f32.mrf.mxu0
      %v993 = vadd.f32 %v904, %v992
      %v994 = vpop.f32.mrf.mxu0
      %v995 = vadd.f32 %v906, %v994
      %996 = vmatmul.bf16.gmra.mxu0 %v535
      %v997 = vpop.f32.mrf.mxu0
      %v998 = vadd.f32 %v909, %v997
      %v999 = vpop.f32.mrf.mxu0
      %v1000 = vadd.f32 %v911, %v999
      %1001 = vmatmul.bf16.gmra.mxu0 %v539
      %v1002 = vpop.f32.mrf.mxu0
      %v1003 = vadd.f32 %v914, %v1002
      %v1004 = vpop.f32.mrf.mxu0
      %v1005 = vadd.f32 %v916, %v1004
      %1006 = vmatmul.bf16.gmra.mxu0 %v543
      %v1007 = vpop.f32.mrf.mxu0
      %v1008 = vadd.f32 %v919, %v1007
      %v1009 = vpop.f32.mrf.mxu0
      %v1010 = vadd.f32 %v921, %v1009
      %1011 = vmatmul.bf16.gmra.mxu0 %v547
      %v1012 = vpop.f32.mrf.mxu0
      %v1013 = vadd.f32 %v924, %v1012
      %v1014 = vpop.f32.mrf.mxu0
      %v1015 = vadd.f32 %v926, %v1014
      %1016 = vmatmul.bf16.gmra.mxu0 %v551
      %v1017 = vpop.f32.mrf.mxu0
      %v1018 = vadd.f32 %v929, %v1017
      %v1019 = vpop.f32.mrf.mxu0
      %v1020 = vadd.f32 %v931, %v1019
      %1021 = vmatmul.bf16.gmra.mxu0 %v555
      %v1022 = vpop.f32.mrf.mxu0
      %v1023 = vadd.f32 %v934, %v1022
      %v1024 = vpop.f32.mrf.mxu0
      %v1025 = vadd.f32 %v936, %v1024
      %1026 = vmatmul.bf16.gmra.mxu0 %v559
      %v1027 = vpop.f32.mrf.mxu0
      %v1028 = vadd.f32 %v939, %v1027
      %v1029 = vpop.f32.mrf.mxu0
      %v1030 = vadd.f32 %v941, %v1029
      %1031 = vmatmul.bf16.gmra.mxu0 %v563
      %v1032 = vpop.f32.mrf.mxu0
      %v1033 = vadd.f32 %v944, %v1032
      %v1034 = vpop.f32.mrf.mxu0
      %v1035 = vadd.f32 %v946, %v1034
      %1036 = vdwg.mxu0
      %1037 = vmatpush.bf16.msra.mxu0 %v818
      %1038 = vmatpush.bf16.msra.mxu0 %v817
      %1039 = vmatpush.bf16.msra.mxu0 %v816
      %1040 = vmatpush.bf16.msra.mxu0 %v815
      %1041 = vmatpush.bf16.msra.mxu0 %v814
      %1042 = vmatpush.bf16.msra.mxu0 %v813
      %1043 = vmatpush.bf16.msra.mxu0 %v812
      %1044 = vmatpush.bf16.msra.mxu0 %v811
      %1045 = vmatmul.bf16.gmra.mxu0 %v504
      %v1046 = vpop.f32.mrf.mxu0
      %v1047 = vadd.f32 %v958, %v1046
      %v1048 = vpop.f32.mrf.mxu0
      %v1049 = vadd.f32 %v960, %v1048
      %1050 = vmatmul.bf16.gmra.mxu0 %v508
      %v1051 = vpop.f32.mrf.mxu0
      %v1052 = vadd.f32 %v963, %v1051
      %v1053 = vpop.f32.mrf.mxu0
      %v1054 = vadd.f32 %v965, %v1053
      %1055 = vmatmul.bf16.gmra.mxu0 %v512
      %v1056 = vpop.f32.mrf.mxu0
      %v1057 = vadd.f32 %v968, %v1056
      %v1058 = vpop.f32.mrf.mxu0
      %v1059 = vadd.f32 %v970, %v1058
      %1060 = vmatmul.bf16.gmra.mxu0 %v516
      %v1061 = vpop.f32.mrf.mxu0
      %v1062 = vadd.f32 %v973, %v1061
      %v1063 = vpop.f32.mrf.mxu0
      %v1064 = vadd.f32 %v975, %v1063
      %1065 = vmatmul.bf16.gmra.mxu0 %v520
      %v1066 = vpop.f32.mrf.mxu0
      %v1067 = vadd.f32 %v978, %v1066
      %v1068 = vpop.f32.mrf.mxu0
      %v1069 = vadd.f32 %v980, %v1068
      %1070 = vmatmul.bf16.gmra.mxu0 %v524
      %v1071 = vpop.f32.mrf.mxu0
      %v1072 = vadd.f32 %v983, %v1071
      %v1073 = vpop.f32.mrf.mxu0
      %v1074 = vadd.f32 %v985, %v1073
      %1075 = vmatmul.bf16.gmra.mxu0 %v528
      %v1076 = vpop.f32.mrf.mxu0
      %v1077 = vadd.f32 %v988, %v1076
      %v1078 = vpop.f32.mrf.mxu0
      %v1079 = vadd.f32 %v990, %v1078
      %1080 = vmatmul.bf16.gmra.mxu0 %v532
      %v1081 = vpop.f32.mrf.mxu0
      %v1082 = vadd.f32 %v993, %v1081
      %v1083 = vpop.f32.mrf.mxu0
      %v1084 = vadd.f32 %v995, %v1083
      %1085 = vmatmul.bf16.gmra.mxu0 %v536
      %v1086 = vpop.f32.mrf.mxu0
      %v1087 = vadd.f32 %v998, %v1086
      %v1088 = vpop.f32.mrf.mxu0
      %v1089 = vadd.f32 %v1000, %v1088
      %1090 = vmatmul.bf16.gmra.mxu0 %v540
      %v1091 = vpop.f32.mrf.mxu0
      %v1092 = vadd.f32 %v1003, %v1091
      %v1093 = vpop.f32.mrf.mxu0
      %v1094 = vadd.f32 %v1005, %v1093
      %1095 = vmatmul.bf16.gmra.mxu0 %v544
      %v1096 = vpop.f32.mrf.mxu0
      %v1097 = vadd.f32 %v1008, %v1096
      %v1098 = vpop.f32.mrf.mxu0
      %v1099 = vadd.f32 %v1010, %v1098
      %1100 = vmatmul.bf16.gmra.mxu0 %v548
      %v1101 = vpop.f32.mrf.mxu0
      %v1102 = vadd.f32 %v1013, %v1101
      %v1103 = vpop.f32.mrf.mxu0
      %v1104 = vadd.f32 %v1015, %v1103
      %1105 = vmatmul.bf16.gmra.mxu0 %v552
      %v1106 = vpop.f32.mrf.mxu0
      %v1107 = vadd.f32 %v1018, %v1106
      %v1108 = vpop.f32.mrf.mxu0
      %v1109 = vadd.f32 %v1020, %v1108
      %1110 = vmatmul.bf16.gmra.mxu0 %v556
      %v1111 = vpop.f32.mrf.mxu0
      %v1112 = vadd.f32 %v1023, %v1111
      %v1113 = vpop.f32.mrf.mxu0
      %v1114 = vadd.f32 %v1025, %v1113
      %1115 = vmatmul.bf16.gmra.mxu0 %v560
      %v1116 = vpop.f32.mrf.mxu0
      %v1117 = vadd.f32 %v1028, %v1116
      %v1118 = vpop.f32.mrf.mxu0
      %v1119 = vadd.f32 %v1030, %v1118
      %1120 = vmatmul.bf16.gmra.mxu0 %v564
      %v1121 = vpop.f32.mrf.mxu0
      %v1122 = vadd.f32 %v1033, %v1121
      %v1123 = vpop.f32.mrf.mxu0
      %v1124 = vadd.f32 %v1035, %v1123
      %1125 = vdwg.mxu0
      %1126 = vmatpush.bf16.msra.mxu0 %v826
      %1127 = vmatpush.bf16.msra.mxu0 %v825
      %1128 = vmatpush.bf16.msra.mxu0 %v824
      %1129 = vmatpush.bf16.msra.mxu0 %v823
      %1130 = vmatpush.bf16.msra.mxu0 %v822
      %1131 = vmatpush.bf16.msra.mxu0 %v821
      %1132 = vmatpush.bf16.msra.mxu0 %v820
      %1133 = vmatpush.bf16.msra.mxu0 %v819
      %1134 = vmatmul.bf16.gmra.mxu0 %v505
      %v1135 = vpop.f32.mrf.mxu0
      %v1136 = vadd.f32 %v1047, %v1135
      %v1137 = vpop.f32.mrf.mxu0
      %v1138 = vadd.f32 %v1049, %v1137
      %1139 = vmatmul.bf16.gmra.mxu0 %v509
      %v1140 = vpop.f32.mrf.mxu0
      %v1141 = vadd.f32 %v1052, %v1140
      %v1142 = vpop.f32.mrf.mxu0
      %v1143 = vadd.f32 %v1054, %v1142
      %1144 = vmatmul.bf16.gmra.mxu0 %v513
      %v1145 = vpop.f32.mrf.mxu0
      %v1146 = vadd.f32 %v1057, %v1145
      %v1147 = vpop.f32.mrf.mxu0
      %v1148 = vadd.f32 %v1059, %v1147
      %1149 = vmatmul.bf16.gmra.mxu0 %v517
      %v1150 = vpop.f32.mrf.mxu0
      %v1151 = vadd.f32 %v1062, %v1150
      %v1152 = vpop.f32.mrf.mxu0
      %v1153 = vadd.f32 %v1064, %v1152
      %1154 = vmatmul.bf16.gmra.mxu0 %v521
      %v1155 = vpop.f32.mrf.mxu0
      %v1156 = vadd.f32 %v1067, %v1155
      %v1157 = vpop.f32.mrf.mxu0
      %v1158 = vadd.f32 %v1069, %v1157
      %1159 = vmatmul.bf16.gmra.mxu0 %v525
      %v1160 = vpop.f32.mrf.mxu0
      %v1161 = vadd.f32 %v1072, %v1160
      %v1162 = vpop.f32.mrf.mxu0
      %v1163 = vadd.f32 %v1074, %v1162
      %1164 = vmatmul.bf16.gmra.mxu0 %v529
      %v1165 = vpop.f32.mrf.mxu0
      %v1166 = vadd.f32 %v1077, %v1165
      %v1167 = vpop.f32.mrf.mxu0
      %v1168 = vadd.f32 %v1079, %v1167
      %1169 = vmatmul.bf16.gmra.mxu0 %v533
      %v1170 = vpop.f32.mrf.mxu0
      %v1171 = vadd.f32 %v1082, %v1170
      %v1172 = vpop.f32.mrf.mxu0
      %v1173 = vadd.f32 %v1084, %v1172
      %1174 = vmatmul.bf16.gmra.mxu0 %v537
      %v1175 = vpop.f32.mrf.mxu0
      %v1176 = vadd.f32 %v1087, %v1175
      %v1177 = vpop.f32.mrf.mxu0
      %v1178 = vadd.f32 %v1089, %v1177
      %1179 = vmatmul.bf16.gmra.mxu0 %v541
      %v1180 = vpop.f32.mrf.mxu0
      %v1181 = vadd.f32 %v1092, %v1180
      %v1182 = vpop.f32.mrf.mxu0
      %v1183 = vadd.f32 %v1094, %v1182
      %1184 = vmatmul.bf16.gmra.mxu0 %v545
      %v1185 = vpop.f32.mrf.mxu0
      %v1186 = vadd.f32 %v1097, %v1185
      %v1187 = vpop.f32.mrf.mxu0
      %v1188 = vadd.f32 %v1099, %v1187
      %1189 = vmatmul.bf16.gmra.mxu0 %v549
      %v1190 = vpop.f32.mrf.mxu0
      %v1191 = vadd.f32 %v1102, %v1190
      %v1192 = vpop.f32.mrf.mxu0
      %v1193 = vadd.f32 %v1104, %v1192
      %1194 = vmatmul.bf16.gmra.mxu0 %v553
      %v1195 = vpop.f32.mrf.mxu0
      %v1196 = vadd.f32 %v1107, %v1195
      %v1197 = vpop.f32.mrf.mxu0
      %v1198 = vadd.f32 %v1109, %v1197
      %1199 = vmatmul.bf16.gmra.mxu0 %v557
      %v1200 = vpop.f32.mrf.mxu0
      %v1201 = vadd.f32 %v1112, %v1200
      %v1202 = vpop.f32.mrf.mxu0
      %v1203 = vadd.f32 %v1114, %v1202
      %1204 = vmatmul.bf16.gmra.mxu0 %v561
      %v1205 = vpop.f32.mrf.mxu0
      %v1206 = vadd.f32 %v1117, %v1205
      %v1207 = vpop.f32.mrf.mxu0
      %v1208 = vadd.f32 %v1119, %v1207
      %1209 = vmatmul.bf16.gmra.mxu0 %v565
      %v1210 = vpop.f32.mrf.mxu0
      %v1211 = vadd.f32 %v1122, %v1210
      %v1212 = vpop.f32.mrf.mxu0
      %v1213 = vadd.f32 %v1124, %v1212
      %1214 = vdwg.mxu0
      %v1215 = vadd.f32 %v635, %v1136
      %v1216 = vadd.f32 %v636, %v1138
      %v1217 = vadd.f32 %v637, %v1141
      %v1218 = vadd.f32 %v638, %v1143
      %v1219 = vadd.f32 %v639, %v1146
      %v1220 = vadd.f32 %v640, %v1148
      %v1221 = vadd.f32 %v641, %v1151
      %v1222 = vadd.f32 %v642, %v1153
      %v1223 = vadd.f32 %v643, %v1156
      %v1224 = vadd.f32 %v644, %v1158
      %v1225 = vadd.f32 %v645, %v1161
      %v1226 = vadd.f32 %v646, %v1163
      %v1227 = vadd.f32 %v647, %v1166
      %v1228 = vadd.f32 %v648, %v1168
      %v1229 = vadd.f32 %v649, %v1171
      %v1230 = vadd.f32 %v650, %v1173
      %v1231 = vadd.f32 %v651, %v1176
      %v1232 = vadd.f32 %v652, %v1178
      %v1233 = vadd.f32 %v653, %v1181
      %v1234 = vadd.f32 %v654, %v1183
      %v1235 = vadd.f32 %v655, %v1186
      %v1236 = vadd.f32 %v656, %v1188
      %v1237 = vadd.f32 %v657, %v1191
      %v1238 = vadd.f32 %v658, %v1193
      %v1239 = vadd.f32 %v659, %v1196
      %v1240 = vadd.f32 %v660, %v1198
      %v1241 = vadd.f32 %v661, %v1201
      %v1242 = vadd.f32 %v662, %v1203
      %v1243 = vadd.f32 %v663, %v1206
      %v1244 = vadd.f32 %v664, %v1208
      %v1245 = vadd.f32 %v665, %v1211
      %v1246 = vadd.f32 %v666, %v1213
      %1247 = vst [vmem:[#allocation2] sm:$0xff] %v1215
      %1248 = vst [vmem:[#allocation2 + $0x8] sm:$0xff] %v1216
      %1249 = vst [vmem:[#allocation2 + $0x10] sm:$0xff] %v1217
      %1250 = vst [vmem:[#allocation2 + $0x18] sm:$0xff] %v1218
      %1251 = vst [vmem:[#allocation2 + $0x20] sm:$0xff] %v1219
      %1252 = vst [vmem:[#allocation2 + $0x28] sm:$0xff] %v1220
      %1253 = vst [vmem:[#allocation2 + $0x30] sm:$0xff] %v1221
      %1254 = vst [vmem:[#allocation2 + $0x38] sm:$0xff] %v1222
      %1255 = vst [vmem:[#allocation2 + $0x40] sm:$0xff] %v1223
      %1256 = vst [vmem:[#allocation2 + $0x48] sm:$0xff] %v1224
      %1257 = vst [vmem:[#allocation2 + $0x50] sm:$0xff] %v1225
      %1258 = vst [vmem:[#allocation2 + $0x58] sm:$0xff] %v1226
      %1259 = vst [vmem:[#allocation2 + $0x60] sm:$0xff] %v1227
      %1260 = vst [vmem:[#allocation2 + $0x68] sm:$0xff] %v1228
      %1261 = vst [vmem:[#allocation2 + $0x70] sm:$0xff] %v1229
      %1262 = vst [vmem:[#allocation2 + $0x78] sm:$0xff] %v1230
      %1263 = vst [vmem:[#allocation2 + $0x80] sm:$0xff] %v1231
      %1264 = vst [vmem:[#allocation2 + $0x88] sm:$0xff] %v1232
      %1265 = vst [vmem:[#allocation2 + $0x90] sm:$0xff] %v1233
      %1266 = vst [vmem:[#allocation2 + $0x98] sm:$0xff] %v1234
      %1267 = vst [vmem:[#allocation2 + $0xa0] sm:$0xff] %v1235
      %1268 = vst [vmem:[#allocation2 + $0xa8] sm:$0xff] %v1236
      %1269 = vst [vmem:[#allocation2 + $0xb0] sm:$0xff] %v1237
      %1270 = vst [vmem:[#allocation2 + $0xb8] sm:$0xff] %v1238
      %1271 = vst [vmem:[#allocation2 + $0xc0] sm:$0xff] %v1239
      %1272 = vst [vmem:[#allocation2 + $0xc8] sm:$0xff] %v1240
      %1273 = vst [vmem:[#allocation2 + $0xd0] sm:$0xff] %v1241
      %1274 = vst [vmem:[#allocation2 + $0xd8] sm:$0xff] %v1242
      %1275 = vst [vmem:[#allocation2 + $0xe0] sm:$0xff] %v1243
      %1276 = vst [vmem:[#allocation2 + $0xe8] sm:$0xff] %v1244
      %1277 = vst [vmem:[#allocation2 + $0xf0] sm:$0xff] %v1245
      %1278 = vst [vmem:[#allocation2 + $0xf8] sm:$0xff] %v1246
      // Predicated region
      $region33: #{gnn_layer.3} parent=27 // pred_check
        %p1279 = pneg %p178
      $region34: #{gnn_layer.3} parent=27 // pred_check_branch
        %1281 = sbr.rel (%p1279) target = $region36
      $region35: #{gnn_layer.3} parent=27 // pred_region
        %v1282 = vld [vmem:[#allocation2] sm:$0xff]
        %v1283 = vld [vmem:[#allocation2 + $0x8] sm:$0xff]
        %v1284 = vld [vmem:[#allocation2 + $0x10] sm:$0xff]
        %v1285 = vld [vmem:[#allocation2 + $0x18] sm:$0xff]
        %v1286 = vld [vmem:[#allocation2 + $0x20] sm:$0xff]
        %v1287 = vld [vmem:[#allocation2 + $0x28] sm:$0xff]
        %v1288 = vld [vmem:[#allocation2 + $0x30] sm:$0xff]
        %v1289 = vld [vmem:[#allocation2 + $0x38] sm:$0xff]
        %v1290 = vld [vmem:[#allocation2 + $0x40] sm:$0xff]
        %v1291 = vld [vmem:[#allocation2 + $0x48] sm:$0xff]
        %v1292 = vld [vmem:[#allocation2 + $0x50] sm:$0xff]
        %v1293 = vld [vmem:[#allocation2 + $0x58] sm:$0xff]
        %v1294 = vld [vmem:[#allocation2 + $0x60] sm:$0xff]
        %v1295 = vld [vmem:[#allocation2 + $0x68] sm:$0xff]
        %v1296 = vld [vmem:[#allocation2 + $0x70] sm:$0xff]
        %v1297 = vld [vmem:[#allocation2 + $0x78] sm:$0xff]
        %v1298 = vld [vmem:[#allocation2 + $0x80] sm:$0xff]
        %v1299 = vld [vmem:[#allocation2 + $0x88] sm:$0xff]
        %v1300 = vld [vmem:[#allocation2 + $0x90] sm:$0xff]
        %v1301 = vld [vmem:[#allocation2 + $0x98] sm:$0xff]
        %v1302 = vld [vmem:[#allocation2 + $0xa0] sm:$0xff]
        %v1303 = vld [vmem:[#allocation2 + $0xa8] sm:$0xff]
        %v1304 = vld [vmem:[#allocation2 + $0xb0] sm:$0xff]
        %v1305 = vld [vmem:[#allocation2 + $0xb8] sm:$0xff]
        %v1306 = vld [vmem:[#allocation2 + $0xc0] sm:$0xff]
        %v1307 = vld [vmem:[#allocation2 + $0xc8] sm:$0xff]
        %v1308 = vld [vmem:[#allocation2 + $0xd0] sm:$0xff]
        %v1309 = vld [vmem:[#allocation2 + $0xd8] sm:$0xff]
        %v1310 = vld [vmem:[#allocation2 + $0xe0] sm:$0xff]
        %v1311 = vld [vmem:[#allocation2 + $0xe8] sm:$0xff]
        %v1312 = vld [vmem:[#allocation2 + $0xf0] sm:$0xff]
        %v1313 = vld [vmem:[#allocation2 + $0xf8] sm:$0xff]
        %1314 = vst [vmem:[%s176] sm:$0xff] %v1282
        %1315 = vst [vmem:[%s176 + $0x8] sm:$0xff] %v1283
        %1316 = vst [vmem:[%s176 + $0x10] sm:$0xff] %v1284
        %1317 = vst [vmem:[%s176 + $0x18] sm:$0xff] %v1285
        %1318 = vst [vmem:[%s176 + $0x20] sm:$0xff] %v1286
        %1319 = vst [vmem:[%s176 + $0x28] sm:$0xff] %v1287
        %1320 = vst [vmem:[%s176 + $0x30] sm:$0xff] %v1288
        %1321 = vst [vmem:[%s176 + $0x38] sm:$0xff] %v1289
        %1322 = vst [vmem:[%s176 + $0x40] sm:$0xff] %v1290
        %1323 = vst [vmem:[%s176 + $0x48] sm:$0xff] %v1291
        %1324 = vst [vmem:[%s176 + $0x50] sm:$0xff] %v1292
        %1325 = vst [vmem:[%s176 + $0x58] sm:$0xff] %v1293
        %1326 = vst [vmem:[%s176 + $0x60] sm:$0xff] %v1294
        %1327 = vst [vmem:[%s176 + $0x68] sm:$0xff] %v1295
        %1328 = vst [vmem:[%s176 + $0x70] sm:$0xff] %v1296
        %1329 = vst [vmem:[%s176 + $0x78] sm:$0xff] %v1297
        %1330 = vst [vmem:[%s176 + $0x80] sm:$0xff] %v1298
        %1331 = vst [vmem:[%s176 + $0x88] sm:$0xff] %v1299
        %1332 = vst [vmem:[%s176 + $0x90] sm:$0xff] %v1300
        %1333 = vst [vmem:[%s176 + $0x98] sm:$0xff] %v1301
        %1334 = vst [vmem:[%s176 + $0xa0] sm:$0xff] %v1302
        %1335 = vst [vmem:[%s176 + $0xa8] sm:$0xff] %v1303
        %1336 = vst [vmem:[%s176 + $0xb0] sm:$0xff] %v1304
        %1337 = vst [vmem:[%s176 + $0xb8] sm:$0xff] %v1305
        %1338 = vst [vmem:[%s176 + $0xc0] sm:$0xff] %v1306
        %1339 = vst [vmem:[%s176 + $0xc8] sm:$0xff] %v1307
        %1340 = vst [vmem:[%s176 + $0xd0] sm:$0xff] %v1308
        %1341 = vst [vmem:[%s176 + $0xd8] sm:$0xff] %v1309
        %1342 = vst [vmem:[%s176 + $0xe0] sm:$0xff] %v1310
        %1343 = vst [vmem:[%s176 + $0xe8] sm:$0xff] %v1311
        %1344 = vst [vmem:[%s176 + $0xf0] sm:$0xff] %v1312
        %1345 = vst [vmem:[%s176 + $0xf8] sm:$0xff] %v1313
      $region36: #{gnn_layer.3} parent=27 // pred_fallthru
        _
      %s1346 = smul.u32 32, %s17
      %p1347 = scmp.lt.s32.totalorder %s1346, 63
      %s1348 = scalar_select %p1347, %s1346, 63
      %s1349 = smul.addr %s1348, 8
      %s1350 = scalar_lea.vmem %s2, %s1349
      // Predicated region
      $region37: #{gnn_layer.3} parent=27 // pred_check
        %p1351 = pneg %p92
      $region38: #{gnn_layer.3} parent=27 // pred_check_branch
        %1353 = sbr.rel (%p1351) target = $region40
      $region39: #{gnn_layer.3} parent=27 // pred_region
        %s1354 = smul.u32 32, %s17
      $region40: #{gnn_layer.3} parent=27 // pred_fallthru
        _
    $region28: #{gnn_layer.3} parent=5 // pred_fallthru
      _
    %p1355 = scmp.le.s32.totalorder 2, %s8
    // Predicated region
    $region41: #{gnn_layer.3} parent=5 // pred_check
      %p1356 = pneg %p1355
    $region42: #{gnn_layer.3} parent=5 // pred_check_branch
      %1358 = sbr.rel (%p1356) target = $region44
    $region43: #{gnn_layer.3} parent=5 // pred_region
      %s1359 = ssub.s32 %s8, 2
      // Predicated region
      $region45: #{gnn_layer.3} parent=43 // pred_check
        %p1360 = pneg %p98
      $region46: #{gnn_layer.3} parent=43 // pred_check_branch
        %1362 = sbr.rel (%p1360) target = $region48
      $region47: #{gnn_layer.3} parent=43 // pred_region
        %s1363 = smul.u32 32, %s19
        %p1364 = scmp.lt.s32.totalorder %s1363, 63
        %s1365 = scalar_select %p1364, %s1363, 63
        %s1366 = smul.addr %s1365, 8
        %s1367 = scalar_lea.vmem %s2, %s1366
      $region48: #{gnn_layer.3} parent=43 // pred_fallthru
        _
    $region44: #{gnn_layer.3} parent=5 // pred_fallthru
      _
  $region6: #{gnn_layer.3} parent=0 // loop_footer
    %s12 = sadd.s32 1, %s8
  $region7: #{gnn_layer.3} parent=0 // loop_footer_branch
    %7 = sbr.rel target = $region3
  $region8: #{gnn_layer.3} parent=0 // loop_exit
    _

</llo_original>
